<compile_context>
chip_gen: v5e
topology: v5e:2x2
jax: 0.10.0
libtpu: 0.0.40
codegen_flags: <defaults>
</compile_context>

<pallas_src>
import functools

import jax
import jax.numpy as jnp
from jax.experimental import pallas as pl
from jax.experimental.pallas import tpu as pltpu


# Comfortable scoped-VMEM budget on all generations (v5e/v6e: 128 MiB physical,
# v7x: 64 MiB physical); actual per-step usage is well below this.
_VMEM_LIMIT_BYTES = 48 * 1024 * 1024


# ---------------------------------------------------------------------------
# Fused Conv2d(k=5, stride=2, pad=2) + bias + ReLU kernel (one batch element)
# ---------------------------------------------------------------------------
def _conv5x5_s2_kernel(x_ref, w_ref, b_ref, o_ref, *, Ho, Wo, Cin, Cout, relu):
    # x_ref: (1, 4, Ho+2, Wo+2, Cin) bf16  -- parity-decimated padded image,
    #        plane index p = 2*(row parity) + (col parity) of the padded input.
    # w_ref: (5, 5, Cin, Cout) bf16
    # b_ref: (1, Cout) f32
    # o_ref: (1, Ho, Wo, Cout)
    M = Ho * Wo
    planes = [x_ref[0, p] for p in range(4)]            # each (Ho+2, Wo+2, Cin)
    acc = jnp.zeros((M, Cout), jnp.float32)
    for ki in range(5):
        for kj in range(5):
            p = (ki % 2) * 2 + (kj % 2)
            dr, dc = ki // 2, kj // 2
            tap = planes[p][dr:dr + Ho, dc:dc + Wo, :]  # static window (Ho, Wo, Cin)
            acc = acc + jnp.dot(tap.reshape(M, Cin), w_ref[ki, kj],
                                preferred_element_type=jnp.float32)
    acc = acc + b_ref[...]                              # (1, Cout) broadcast, f32
    if relu:
        acc = jnp.maximum(acc, 0.0)
    o_ref[...] = acc.reshape(1, Ho, Wo, Cout).astype(o_ref.dtype)


def conv5x5_s2(x_nhwc, w, b, *, relu, pad_value=0.0):
    """x_nhwc: (B, H, W, Cin) bf16; w: (5,5,Cin,Cout) bf16; b: (Cout,) f32."""
    B, H, W, Cin = x_nhwc.shape
    Cout = w.shape[-1]
    Ho, Wo = (H + 1) // 2, (W + 1) // 2                 # floor((H+4-5)/2)+1
    Hp, Wp = 2 * Ho + 4, 2 * Wo + 4                     # even padded extents

    # One cheap XLA pass (~1x the input): pad + even/odd row/col decimation so
    # the stride-2 sampling becomes static contiguous slices inside the kernel.
    xp = jnp.pad(x_nhwc,
                 ((0, 0), (2, Hp - H - 2), (2, Wp - W - 2), (0, 0)),
                 constant_values=jnp.asarray(pad_value, x_nhwc.dtype))
    xpar = jnp.stack(
        [xp[:, 0::2, 0::2, :], xp[:, 0::2, 1::2, :],
         xp[:, 1::2, 0::2, :], xp[:, 1::2, 1::2, :]],
        axis=1)                                          # (B, 4, Ho+2, Wo+2, Cin)

    kern = functools.partial(_conv5x5_s2_kernel,
                             Ho=Ho, Wo=Wo, Cin=Cin, Cout=Cout, relu=relu)
    return pl.pallas_call(
        kern,
        grid=(B,),
        in_specs=[
            pl.BlockSpec((1, 4, Ho + 2, Wo + 2, Cin), lambda bi: (bi, 0, 0, 0, 0)),
            pl.BlockSpec((5, 5, Cin, Cout), lambda bi: (0, 0, 0, 0)),   # resident weight
            pl.BlockSpec((1, Cout), lambda bi: (0, 0)),                 # resident bias
        ],
        out_specs=pl.BlockSpec((1, Ho, Wo, Cout), lambda bi: (bi, 0, 0, 0)),
        out_shape=jax.ShapeDtypeStruct((B, Ho, Wo, Cout), jnp.bfloat16),
        compiler_params=pltpu.CompilerParams(
            dimension_semantics=("parallel",),           # shard batch across TCs (v7x)
            vmem_limit_bytes=_VMEM_LIMIT_BYTES),
    )(xpar, w, b.reshape(1, Cout))


# ---------------------------------------------------------------------------
# Final Linear: matmul + bias (no activation)
# ---------------------------------------------------------------------------
def _matmul_bias_kernel(x_ref, w_ref, b_ref, o_ref):
    acc = jnp.dot(x_ref[...], w_ref[...], preferred_element_type=jnp.float32)
    o_ref[...] = (acc + b_ref[...]).astype(o_ref.dtype)


def linear(x, w, b):
    # M = batch (tiny) and K, N are small, so a single resident block suffices;
    # the heavy matmuls live in the gridded conv kernel above.
    M = x.shape[0]
    N = w.shape[1]
    return pl.pallas_call(
        _matmul_bias_kernel,
        out_shape=jax.ShapeDtypeStruct((M, N), jnp.float32),
        in_specs=[pl.BlockSpec(memory_space=pltpu.MemorySpace.VMEM)] * 3,
        out_specs=pl.BlockSpec(memory_space=pltpu.MemorySpace.VMEM),
        compiler_params=pltpu.CompilerParams(vmem_limit_bytes=_VMEM_LIMIT_BYTES),
    )(x, w, b.reshape(1, N))


# ---------------------------------------------------------------------------
# Model
# ---------------------------------------------------------------------------
class EncodeMeanNetPallas:
    def __init__(self, key, dim_z, n_win, shape_x, data_mean, data_std):
        chan_x, H, W = shape_x
        self.data_mean = float(data_mean)
        self.data_std = float(data_std)

        cins = [n_win * chan_x, 32, 64, 128, 256]
        couts = [32, 64, 128, 256, 512]
        keys = jax.random.split(key, len(cins) + 1)

        # Conv weights: xavier_normal (fan_in = Cin*25, fan_out = Cout*25), zero bias.
        self.conv_w, self.conv_b = [], []
        for i, (ci, co) in enumerate(zip(cins, couts)):
            std = (2.0 / (25 * ci + 25 * co)) ** 0.5
            w = std * jax.random.normal(keys[i], (5, 5, ci, co), jnp.float32)
            bb = jnp.zeros((co,), jnp.float32)
            if i == 0:
                # Fold the input normalization into conv1:
                #   conv(w, pad((x-mean)/std, 0)) == conv(w/std, pad(x, mean)) - (mean/std)*sum(w)
                # (layer-1 spatial padding uses `mean` in __call__, so the border
                #  semantics stay exact).
                bb = bb - (self.data_mean / self.data_std) * jnp.sum(w, axis=(0, 1, 2))
                w = w / self.data_std
            self.conv_w.append(w.astype(jnp.bfloat16))
            self.conv_b.append(bb)

        Hc, Wc = H, W
        for _ in range(5):
            Hc, Wc = (Hc + 1) // 2, (Wc + 1) // 2
        dim_fc_in = Hc * Wc * 512
        # TODO(synk): reference module hard-codes dim_fc_in = 3*14*512 for its
        # full-size shape_x; here it is derived from the (small) shape_x.
        std = (2.0 / (dim_fc_in + dim_z)) ** 0.5
        fc_w = std * jax.random.normal(keys[-1], (dim_fc_in, dim_z), jnp.float32)
        # Rows are generated in PyTorch's NCHW-flatten order (c, h, w); permute them
        # once so the forward can flatten NHWC directly (no runtime transpose).
        fc_w = (fc_w.reshape(512, Hc, Wc, dim_z)
                    .transpose(1, 2, 0, 3)
                    .reshape(dim_fc_in, dim_z))
        self.fc_w = fc_w.astype(jnp.bfloat16)
        self.fc_b = jnp.zeros((dim_z,), jnp.float32)

    def __call__(self, mu, x_win):
        # `mu` is accepted but unused, matching the PyTorch forward.
        B = x_win.shape[0]
        H, W = x_win.shape[-2], x_win.shape[-1]
        x = x_win.reshape(B, -1, H, W)                         # (B, n_win*chan_x, H, W)
        x = jnp.transpose(x, (0, 2, 3, 1)).astype(jnp.bfloat16)  # NHWC, bf16 operands
        for i, (w, b) in enumerate(zip(self.conv_w, self.conv_b)):
            pad_val = self.data_mean if i == 0 else 0.0        # normalization folded into conv1
            x = conv5x5_s2(x, w, b, relu=True, pad_value=pad_val)
        h = x.reshape(B, -1)                                   # NHWC flatten (fc_w pre-permuted)
        return linear(h, self.fc_w, self.fc_b)


if __name__ == "__main__":
    key = jax.random.PRNGKey(0)
    k_param, k_x, k_mu = jax.random.split(key, 3)

    # Small synthetic config: dim_z=8, n_win=3, shape_x=(4, 16, 16), batch=2.
    dim_z, n_win, chan_x, H, W, B = 8, 3, 4, 16, 16, 2
    net = EncodeMeanNetPallas(
        k_param, dim_z=dim_z, n_win=n_win, shape_x=(chan_x, H, W),
        data_mean=0.5, data_std=2.0,
    )

    x_win = jax.random.normal(k_x, (B, n_win, chan_x, H, W), jnp.float32)
    mu = jax.random.normal(k_mu, (B, dim_z), jnp.float32)

    z = net(mu, x_win)
    jax.block_until_ready(z)
    assert z.shape == (B, dim_z) and z.dtype == jnp.float32
    assert bool(jnp.all(jnp.isfinite(z)))
    print("KERNEL_OK")
</pallas_src>

<mosaic_0001>
module attributes {stable_mosaic.version = 11 : i64} {
  func.func @_conv5x5_s2_kernel(%arg0: i32, %arg1: memref<1x4x10x10x12xbf16, #tpu.memory_space<vmem>>, %arg2: memref<5x5x12x32xbf16, #tpu.memory_space<vmem>>, %arg3: memref<1x32xf32, #tpu.memory_space<vmem>>, %arg4: memref<1x8x8x32xbf16, #tpu.memory_space<vmem>>) attributes {dimension_semantics = [#tpu.dimension_semantics<parallel>], iteration_bounds = array<i64: 2>, scalar_prefetch = 0 : i64, scratch_operands = 0 : i64, tpu.core_type = #tpu.core_type<tc>, window_params = [{transform_indices = @transform_0, window_bounds = array<i64: 1, 4, 10, 10, 12>}, {pipeline_mode = #tpu.pipeline_mode<synchronous>, transform_indices = @transform_1, window_bounds = array<i64: 5, 5, 12, 32>}, {pipeline_mode = #tpu.pipeline_mode<synchronous>, transform_indices = @transform_2, window_bounds = array<i64: 1, 32>}, {transform_indices = @transform_3, window_bounds = array<i64: 1, 8, 8, 32>}]} {
    %c0 = arith.constant 0 : index
    %c0_0 = arith.constant 0 : index
    %c0_1 = arith.constant 0 : index
    %c0_2 = arith.constant 0 : index
    %c0_3 = arith.constant 0 : index
    %0 = vector.load %arg1[%c0, %c0_0, %c0_1, %c0_2, %c0_3] : memref<1x4x10x10x12xbf16, #tpu.memory_space<vmem>>, vector<1x1x10x10x12xbf16>
    %1 = vector.shape_cast %0 : vector<1x1x10x10x12xbf16> to vector<10x10x12xbf16>
    %c0_4 = arith.constant 0 : index
    %c1 = arith.constant 1 : index
    %c0_5 = arith.constant 0 : index
    %c0_6 = arith.constant 0 : index
    %c0_7 = arith.constant 0 : index
    %2 = vector.load %arg1[%c0_4, %c1, %c0_5, %c0_6, %c0_7] : memref<1x4x10x10x12xbf16, #tpu.memory_space<vmem>>, vector<1x1x10x10x12xbf16>
    %3 = vector.shape_cast %2 : vector<1x1x10x10x12xbf16> to vector<10x10x12xbf16>
    %c0_8 = arith.constant 0 : index
    %c2 = arith.constant 2 : index
    %c0_9 = arith.constant 0 : index
    %c0_10 = arith.constant 0 : index
    %c0_11 = arith.constant 0 : index
    %4 = vector.load %arg1[%c0_8, %c2, %c0_9, %c0_10, %c0_11] : memref<1x4x10x10x12xbf16, #tpu.memory_space<vmem>>, vector<1x1x10x10x12xbf16>
    %5 = vector.shape_cast %4 : vector<1x1x10x10x12xbf16> to vector<10x10x12xbf16>
    %c0_12 = arith.constant 0 : index
    %c3 = arith.constant 3 : index
    %c0_13 = arith.constant 0 : index
    %c0_14 = arith.constant 0 : index
    %c0_15 = arith.constant 0 : index
    %6 = vector.load %arg1[%c0_12, %c3, %c0_13, %c0_14, %c0_15] : memref<1x4x10x10x12xbf16, #tpu.memory_space<vmem>>, vector<1x1x10x10x12xbf16>
    %7 = vector.shape_cast %6 : vector<1x1x10x10x12xbf16> to vector<10x10x12xbf16>
    %cst = arith.constant 0.000000e+00 : f32
    %8 = vector.broadcast %cst : f32 to vector<64x32xf32>
    %9 = vector.extract_strided_slice %1 {offsets = [0, 0, 0], sizes = [8, 8, 12], strides = [1, 1, 1]} : vector<10x10x12xbf16> to vector<8x8x12xbf16>
    %10 = vector.shape_cast %9 : vector<8x8x12xbf16> to vector<64x12xbf16>
    %c0_16 = arith.constant 0 : index
    %c0_17 = arith.constant 0 : index
    %c0_18 = arith.constant 0 : index
    %c0_19 = arith.constant 0 : index
    %11 = vector.load %arg2[%c0_16, %c0_17, %c0_18, %c0_19] : memref<5x5x12x32xbf16, #tpu.memory_space<vmem>>, vector<1x1x12x32xbf16>
    %12 = vector.shape_cast %11 : vector<1x1x12x32xbf16> to vector<12x32xbf16>
    %cst_20 = arith.constant dense<0.000000e+00> : vector<64x32xf32>
    %13 = tpu.matmul %10, %12, %cst_20 {dimension_numbers = #tpu.dot_dimension_numbers<[1], [0], [0], [1], [0, 0, 1, 1], [], []>} : vector<64x12xbf16>, vector<12x32xbf16>, vector<64x32xf32> -> vector<64x32xf32>
    %14 = arith.addf %8, %13 : vector<64x32xf32>
    %15 = vector.extract_strided_slice %3 {offsets = [0, 0, 0], sizes = [8, 8, 12], strides = [1, 1, 1]} : vector<10x10x12xbf16> to vector<8x8x12xbf16>
    %16 = vector.shape_cast %15 : vector<8x8x12xbf16> to vector<64x12xbf16>
    %c0_21 = arith.constant 0 : index
    %c1_22 = arith.constant 1 : index
    %c0_23 = arith.constant 0 : index
    %c0_24 = arith.constant 0 : index
    %17 = vector.load %arg2[%c0_21, %c1_22, %c0_23, %c0_24] : memref<5x5x12x32xbf16, #tpu.memory_space<vmem>>, vector<1x1x12x32xbf16>
    %18 = vector.shape_cast %17 : vector<1x1x12x32xbf16> to vector<12x32xbf16>
    %cst_25 = arith.constant dense<0.000000e+00> : vector<64x32xf32>
    %19 = tpu.matmul %16, %18, %cst_25 {dimension_numbers = #tpu.dot_dimension_numbers<[1], [0], [0], [1], [0, 0, 1, 1], [], []>} : vector<64x12xbf16>, vector<12x32xbf16>, vector<64x32xf32> -> vector<64x32xf32>
    %20 = arith.addf %14, %19 : vector<64x32xf32>
    %21 = vector.extract_strided_slice %1 {offsets = [0, 1, 0], sizes = [8, 8, 12], strides = [1, 1, 1]} : vector<10x10x12xbf16> to vector<8x8x12xbf16>
    %22 = vector.shape_cast %21 : vector<8x8x12xbf16> to vector<64x12xbf16>
    %c0_26 = arith.constant 0 : index
    %c2_27 = arith.constant 2 : index
    %c0_28 = arith.constant 0 : index
    %c0_29 = arith.constant 0 : index
    %23 = vector.load %arg2[%c0_26, %c2_27, %c0_28, %c0_29] : memref<5x5x12x32xbf16, #tpu.memory_space<vmem>>, vector<1x1x12x32xbf16>
    %24 = vector.shape_cast %23 : vector<1x1x12x32xbf16> to vector<12x32xbf16>
    %cst_30 = arith.constant dense<0.000000e+00> : vector<64x32xf32>
    %25 = tpu.matmul %22, %24, %cst_30 {dimension_numbers = #tpu.dot_dimension_numbers<[1], [0], [0], [1], [0, 0, 1, 1], [], []>} : vector<64x12xbf16>, vector<12x32xbf16>, vector<64x32xf32> -> vector<64x32xf32>
    %26 = arith.addf %20, %25 : vector<64x32xf32>
    %27 = vector.extract_strided_slice %3 {offsets = [0, 1, 0], sizes = [8, 8, 12], strides = [1, 1, 1]} : vector<10x10x12xbf16> to vector<8x8x12xbf16>
    %28 = vector.shape_cast %27 : vector<8x8x12xbf16> to vector<64x12xbf16>
    %c0_31 = arith.constant 0 : index
    %c3_32 = arith.constant 3 : index
    %c0_33 = arith.constant 0 : index
    %c0_34 = arith.constant 0 : index
    %29 = vector.load %arg2[%c0_31, %c3_32, %c0_33, %c0_34] : memref<5x5x12x32xbf16, #tpu.memory_space<vmem>>, vector<1x1x12x32xbf16>
    %30 = vector.shape_cast %29 : vector<1x1x12x32xbf16> to vector<12x32xbf16>
    %cst_35 = arith.constant dense<0.000000e+00> : vector<64x32xf32>
    %31 = tpu.matmul %28, %30, %cst_35 {dimension_numbers = #tpu.dot_dimension_numbers<[1], [0], [0], [1], [0, 0, 1, 1], [], []>} : vector<64x12xbf16>, vector<12x32xbf16>, vector<64x32xf32> -> vector<64x32xf32>
    %32 = arith.addf %26, %31 : vector<64x32xf32>
    %33 = vector.extract_strided_slice %1 {offsets = [0, 2, 0], sizes = [8, 8, 12], strides = [1, 1, 1]} : vector<10x10x12xbf16> to vector<8x8x12xbf16>
    %34 = vector.shape_cast %33 : vector<8x8x12xbf16> to vector<64x12xbf16>
    %c0_36 = arith.constant 0 : index
    %c4 = arith.constant 4 : index
    %c0_37 = arith.constant 0 : index
    %c0_38 = arith.constant 0 : index
    %35 = vector.load %arg2[%c0_36, %c4, %c0_37, %c0_38] : memref<5x5x12x32xbf16, #tpu.memory_space<vmem>>, vector<1x1x12x32xbf16>
    %36 = vector.shape_cast %35 : vector<1x1x12x32xbf16> to vector<12x32xbf16>
    %cst_39 = arith.constant dense<0.000000e+00> : vector<64x32xf32>
    %37 = tpu.matmul %34, %36, %cst_39 {dimension_numbers = #tpu.dot_dimension_numbers<[1], [0], [0], [1], [0, 0, 1, 1], [], []>} : vector<64x12xbf16>, vector<12x32xbf16>, vector<64x32xf32> -> vector<64x32xf32>
    %38 = arith.addf %32, %37 : vector<64x32xf32>
    %39 = vector.extract_strided_slice %5 {offsets = [0, 0, 0], sizes = [8, 8, 12], strides = [1, 1, 1]} : vector<10x10x12xbf16> to vector<8x8x12xbf16>
    %40 = vector.shape_cast %39 : vector<8x8x12xbf16> to vector<64x12xbf16>
    %c1_40 = arith.constant 1 : index
    %c0_41 = arith.constant 0 : index
    %c0_42 = arith.constant 0 : index
    %c0_43 = arith.constant 0 : index
    %41 = vector.load %arg2[%c1_40, %c0_41, %c0_42, %c0_43] : memref<5x5x12x32xbf16, #tpu.memory_space<vmem>>, vector<1x1x12x32xbf16>
    %42 = vector.shape_cast %41 : vector<1x1x12x32xbf16> to vector<12x32xbf16>
    %cst_44 = arith.constant dense<0.000000e+00> : vector<64x32xf32>
    %43 = tpu.matmul %40, %42, %cst_44 {dimension_numbers = #tpu.dot_dimension_numbers<[1], [0], [0], [1], [0, 0, 1, 1], [], []>} : vector<64x12xbf16>, vector<12x32xbf16>, vector<64x32xf32> -> vector<64x32xf32>
    %44 = arith.addf %38, %43 : vector<64x32xf32>
    %45 = vector.extract_strided_slice %7 {offsets = [0, 0, 0], sizes = [8, 8, 12], strides = [1, 1, 1]} : vector<10x10x12xbf16> to vector<8x8x12xbf16>
    %46 = vector.shape_cast %45 : vector<8x8x12xbf16> to vector<64x12xbf16>
    %c1_45 = arith.constant 1 : index
    %c1_46 = arith.constant 1 : index
    %c0_47 = arith.constant 0 : index
    %c0_48 = arith.constant 0 : index
    %47 = vector.load %arg2[%c1_45, %c1_46, %c0_47, %c0_48] : memref<5x5x12x32xbf16, #tpu.memory_space<vmem>>, vector<1x1x12x32xbf16>
    %48 = vector.shape_cast %47 : vector<1x1x12x32xbf16> to vector<12x32xbf16>
    %cst_49 = arith.constant dense<0.000000e+00> : vector<64x32xf32>
    %49 = tpu.matmul %46, %48, %cst_49 {dimension_numbers = #tpu.dot_dimension_numbers<[1], [0], [0], [1], [0, 0, 1, 1], [], []>} : vector<64x12xbf16>, vector<12x32xbf16>, vector<64x32xf32> -> vector<64x32xf32>
    %50 = arith.addf %44, %49 : vector<64x32xf32>
    %51 = vector.extract_strided_slice %5 {offsets = [0, 1, 0], sizes = [8, 8, 12], strides = [1, 1, 1]} : vector<10x10x12xbf16> to vector<8x8x12xbf16>
    %52 = vector.shape_cast %51 : vector<8x8x12xbf16> to vector<64x12xbf16>
    %c1_50 = arith.constant 1 : index
    %c2_51 = arith.constant 2 : index
    %c0_52 = arith.constant 0 : index
    %c0_53 = arith.constant 0 : index
    %53 = vector.load %arg2[%c1_50, %c2_51, %c0_52, %c0_53] : memref<5x5x12x32xbf16, #tpu.memory_space<vmem>>, vector<1x1x12x32xbf16>
    %54 = vector.shape_cast %53 : vector<1x1x12x32xbf16> to vector<12x32xbf16>
    %cst_54 = arith.constant dense<0.000000e+00> : vector<64x32xf32>
    %55 = tpu.matmul %52, %54, %cst_54 {dimension_numbers = #tpu.dot_dimension_numbers<[1], [0], [0], [1], [0, 0, 1, 1], [], []>} : vector<64x12xbf16>, vector<12x32xbf16>, vector<64x32xf32> -> vector<64x32xf32>
    %56 = arith.addf %50, %55 : vector<64x32xf32>
    %57 = vector.extract_strided_slice %7 {offsets = [0, 1, 0], sizes = [8, 8, 12], strides = [1, 1, 1]} : vector<10x10x12xbf16> to vector<8x8x12xbf16>
    %58 = vector.shape_cast %57 : vector<8x8x12xbf16> to vector<64x12xbf16>
    %c1_55 = arith.constant 1 : index
    %c3_56 = arith.constant 3 : index
    %c0_57 = arith.constant 0 : index
    %c0_58 = arith.constant 0 : index
    %59 = vector.load %arg2[%c1_55, %c3_56, %c0_57, %c0_58] : memref<5x5x12x32xbf16, #tpu.memory_space<vmem>>, vector<1x1x12x32xbf16>
    %60 = vector.shape_cast %59 : vector<1x1x12x32xbf16> to vector<12x32xbf16>
    %cst_59 = arith.constant dense<0.000000e+00> : vector<64x32xf32>
    %61 = tpu.matmul %58, %60, %cst_59 {dimension_numbers = #tpu.dot_dimension_numbers<[1], [0], [0], [1], [0, 0, 1, 1], [], []>} : vector<64x12xbf16>, vector<12x32xbf16>, vector<64x32xf32> -> vector<64x32xf32>
    %62 = arith.addf %56, %61 : vector<64x32xf32>
    %63 = vector.extract_strided_slice %5 {offsets = [0, 2, 0], sizes = [8, 8, 12], strides = [1, 1, 1]} : vector<10x10x12xbf16> to vector<8x8x12xbf16>
    %64 = vector.shape_cast %63 : vector<8x8x12xbf16> to vector<64x12xbf16>
    %c1_60 = arith.constant 1 : index
    %c4_61 = arith.constant 4 : index
    %c0_62 = arith.constant 0 : index
    %c0_63 = arith.constant 0 : index
    %65 = vector.load %arg2[%c1_60, %c4_61, %c0_62, %c0_63] : memref<5x5x12x32xbf16, #tpu.memory_space<vmem>>, vector<1x1x12x32xbf16>
    %66 = vector.shape_cast %65 : vector<1x1x12x32xbf16> to vector<12x32xbf16>
    %cst_64 = arith.constant dense<0.000000e+00> : vector<64x32xf32>
    %67 = tpu.matmul %64, %66, %cst_64 {dimension_numbers = #tpu.dot_dimension_numbers<[1], [0], [0], [1], [0, 0, 1, 1], [], []>} : vector<64x12xbf16>, vector<12x32xbf16>, vector<64x32xf32> -> vector<64x32xf32>
    %68 = arith.addf %62, %67 : vector<64x32xf32>
    %69 = vector.extract_strided_slice %1 {offsets = [1, 0, 0], sizes = [8, 8, 12], strides = [1, 1, 1]} : vector<10x10x12xbf16> to vector<8x8x12xbf16>
    %70 = vector.shape_cast %69 : vector<8x8x12xbf16> to vector<64x12xbf16>
    %c2_65 = arith.constant 2 : index
    %c0_66 = arith.constant 0 : index
    %c0_67 = arith.constant 0 : index
    %c0_68 = arith.constant 0 : index
    %71 = vector.load %arg2[%c2_65, %c0_66, %c0_67, %c0_68] : memref<5x5x12x32xbf16, #tpu.memory_space<vmem>>, vector<1x1x12x32xbf16>
    %72 = vector.shape_cast %71 : vector<1x1x12x32xbf16> to vector<12x32xbf16>
    %cst_69 = arith.constant dense<0.000000e+00> : vector<64x32xf32>
    %73 = tpu.matmul %70, %72, %cst_69 {dimension_numbers = #tpu.dot_dimension_numbers<[1], [0], [0], [1], [0, 0, 1, 1], [], []>} : vector<64x12xbf16>, vector<12x32xbf16>, vector<64x32xf32> -> vector<64x32xf32>
    %74 = arith.addf %68, %73 : vector<64x32xf32>
    %75 = vector.extract_strided_slice %3 {offsets = [1, 0, 0], sizes = [8, 8, 12], strides = [1, 1, 1]} : vector<10x10x12xbf16> to vector<8x8x12xbf16>
    %76 = vector.shape_cast %75 : vector<8x8x12xbf16> to vector<64x12xbf16>
    %c2_70 = arith.constant 2 : index
    %c1_71 = arith.constant 1 : index
    %c0_72 = arith.constant 0 : index
    %c0_73 = arith.constant 0 : index
    %77 = vector.load %arg2[%c2_70, %c1_71, %c0_72, %c0_73] : memref<5x5x12x32xbf16, #tpu.memory_space<vmem>>, vector<1x1x12x32xbf16>
    %78 = vector.shape_cast %77 : vector<1x1x12x32xbf16> to vector<12x32xbf16>
    %cst_74 = arith.constant dense<0.000000e+00> : vector<64x32xf32>
    %79 = tpu.matmul %76, %78, %cst_74 {dimension_numbers = #tpu.dot_dimension_numbers<[1], [0], [0], [1], [0, 0, 1, 1], [], []>} : vector<64x12xbf16>, vector<12x32xbf16>, vector<64x32xf32> -> vector<64x32xf32>
    %80 = arith.addf %74, %79 : vector<64x32xf32>
    %81 = vector.extract_strided_slice %1 {offsets = [1, 1, 0], sizes = [8, 8, 12], strides = [1, 1, 1]} : vector<10x10x12xbf16> to vector<8x8x12xbf16>
    %82 = vector.shape_cast %81 : vector<8x8x12xbf16> to vector<64x12xbf16>
    %c2_75 = arith.constant 2 : index
    %c2_76 = arith.constant 2 : index
    %c0_77 = arith.constant 0 : index
    %c0_78 = arith.constant 0 : index
    %83 = vector.load %arg2[%c2_75, %c2_76, %c0_77, %c0_78] : memref<5x5x12x32xbf16, #tpu.memory_space<vmem>>, vector<1x1x12x32xbf16>
    %84 = vector.shape_cast %83 : vector<1x1x12x32xbf16> to vector<12x32xbf16>
    %cst_79 = arith.constant dense<0.000000e+00> : vector<64x32xf32>
    %85 = tpu.matmul %82, %84, %cst_79 {dimension_numbers = #tpu.dot_dimension_numbers<[1], [0], [0], [1], [0, 0, 1, 1], [], []>} : vector<64x12xbf16>, vector<12x32xbf16>, vector<64x32xf32> -> vector<64x32xf32>
    %86 = arith.addf %80, %85 : vector<64x32xf32>
    %87 = vector.extract_strided_slice %3 {offsets = [1, 1, 0], sizes = [8, 8, 12], strides = [1, 1, 1]} : vector<10x10x12xbf16> to vector<8x8x12xbf16>
    %88 = vector.shape_cast %87 : vector<8x8x12xbf16> to vector<64x12xbf16>
    %c2_80 = arith.constant 2 : index
    %c3_81 = arith.constant 3 : index
    %c0_82 = arith.constant 0 : index
    %c0_83 = arith.constant 0 : index
    %89 = vector.load %arg2[%c2_80, %c3_81, %c0_82, %c0_83] : memref<5x5x12x32xbf16, #tpu.memory_space<vmem>>, vector<1x1x12x32xbf16>
    %90 = vector.shape_cast %89 : vector<1x1x12x32xbf16> to vector<12x32xbf16>
    %cst_84 = arith.constant dense<0.000000e+00> : vector<64x32xf32>
    %91 = tpu.matmul %88, %90, %cst_84 {dimension_numbers = #tpu.dot_dimension_numbers<[1], [0], [0], [1], [0, 0, 1, 1], [], []>} : vector<64x12xbf16>, vector<12x32xbf16>, vector<64x32xf32> -> vector<64x32xf32>
    %92 = arith.addf %86, %91 : vector<64x32xf32>
    %93 = vector.extract_strided_slice %1 {offsets = [1, 2, 0], sizes = [8, 8, 12], strides = [1, 1, 1]} : vector<10x10x12xbf16> to vector<8x8x12xbf16>
    %94 = vector.shape_cast %93 : vector<8x8x12xbf16> to vector<64x12xbf16>
    %c2_85 = arith.constant 2 : index
    %c4_86 = arith.constant 4 : index
    %c0_87 = arith.constant 0 : index
    %c0_88 = arith.constant 0 : index
    %95 = vector.load %arg2[%c2_85, %c4_86, %c0_87, %c0_88] : memref<5x5x12x32xbf16, #tpu.memory_space<vmem>>, vector<1x1x12x32xbf16>
    %96 = vector.shape_cast %95 : vector<1x1x12x32xbf16> to vector<12x32xbf16>
    %cst_89 = arith.constant dense<0.000000e+00> : vector<64x32xf32>
    %97 = tpu.matmul %94, %96, %cst_89 {dimension_numbers = #tpu.dot_dimension_numbers<[1], [0], [0], [1], [0, 0, 1, 1], [], []>} : vector<64x12xbf16>, vector<12x32xbf16>, vector<64x32xf32> -> vector<64x32xf32>
    %98 = arith.addf %92, %97 : vector<64x32xf32>
    %99 = vector.extract_strided_slice %5 {offsets = [1, 0, 0], sizes = [8, 8, 12], strides = [1, 1, 1]} : vector<10x10x12xbf16> to vector<8x8x12xbf16>
    %100 = vector.shape_cast %99 : vector<8x8x12xbf16> to vector<64x12xbf16>
    %c3_90 = arith.constant 3 : index
    %c0_91 = arith.constant 0 : index
    %c0_92 = arith.constant 0 : index
    %c0_93 = arith.constant 0 : index
    %101 = vector.load %arg2[%c3_90, %c0_91, %c0_92, %c0_93] : memref<5x5x12x32xbf16, #tpu.memory_space<vmem>>, vector<1x1x12x32xbf16>
    %102 = vector.shape_cast %101 : vector<1x1x12x32xbf16> to vector<12x32xbf16>
    %cst_94 = arith.constant dense<0.000000e+00> : vector<64x32xf32>
    %103 = tpu.matmul %100, %102, %cst_94 {dimension_numbers = #tpu.dot_dimension_numbers<[1], [0], [0], [1], [0, 0, 1, 1], [], []>} : vector<64x12xbf16>, vector<12x32xbf16>, vector<64x32xf32> -> vector<64x32xf32>
    %104 = arith.addf %98, %103 : vector<64x32xf32>
    %105 = vector.extract_strided_slice %7 {offsets = [1, 0, 0], sizes = [8, 8, 12], strides = [1, 1, 1]} : vector<10x10x12xbf16> to vector<8x8x12xbf16>
    %106 = vector.shape_cast %105 : vector<8x8x12xbf16> to vector<64x12xbf16>
    %c3_95 = arith.constant 3 : index
    %c1_96 = arith.constant 1 : index
    %c0_97 = arith.constant 0 : index
    %c0_98 = arith.constant 0 : index
    %107 = vector.load %arg2[%c3_95, %c1_96, %c0_97, %c0_98] : memref<5x5x12x32xbf16, #tpu.memory_space<vmem>>, vector<1x1x12x32xbf16>
    %108 = vector.shape_cast %107 : vector<1x1x12x32xbf16> to vector<12x32xbf16>
    %cst_99 = arith.constant dense<0.000000e+00> : vector<64x32xf32>
    %109 = tpu.matmul %106, %108, %cst_99 {dimension_numbers = #tpu.dot_dimension_numbers<[1], [0], [0], [1], [0, 0, 1, 1], [], []>} : vector<64x12xbf16>, vector<12x32xbf16>, vector<64x32xf32> -> vector<64x32xf32>
    %110 = arith.addf %104, %109 : vector<64x32xf32>
    %111 = vector.extract_strided_slice %5 {offsets = [1, 1, 0], sizes = [8, 8, 12], strides = [1, 1, 1]} : vector<10x10x12xbf16> to vector<8x8x12xbf16>
    %112 = vector.shape_cast %111 : vector<8x8x12xbf16> to vector<64x12xbf16>
    %c3_100 = arith.constant 3 : index
    %c2_101 = arith.constant 2 : index
    %c0_102 = arith.constant 0 : index
    %c0_103 = arith.constant 0 : index
    %113 = vector.load %arg2[%c3_100, %c2_101, %c0_102, %c0_103] : memref<5x5x12x32xbf16, #tpu.memory_space<vmem>>, vector<1x1x12x32xbf16>
    %114 = vector.shape_cast %113 : vector<1x1x12x32xbf16> to vector<12x32xbf16>
    %cst_104 = arith.constant dense<0.000000e+00> : vector<64x32xf32>
    %115 = tpu.matmul %112, %114, %cst_104 {dimension_numbers = #tpu.dot_dimension_numbers<[1], [0], [0], [1], [0, 0, 1, 1], [], []>} : vector<64x12xbf16>, vector<12x32xbf16>, vector<64x32xf32> -> vector<64x32xf32>
    %116 = arith.addf %110, %115 : vector<64x32xf32>
    %117 = vector.extract_strided_slice %7 {offsets = [1, 1, 0], sizes = [8, 8, 12], strides = [1, 1, 1]} : vector<10x10x12xbf16> to vector<8x8x12xbf16>
    %118 = vector.shape_cast %117 : vector<8x8x12xbf16> to vector<64x12xbf16>
    %c3_105 = arith.constant 3 : index
    %c3_106 = arith.constant 3 : index
    %c0_107 = arith.constant 0 : index
    %c0_108 = arith.constant 0 : index
    %119 = vector.load %arg2[%c3_105, %c3_106, %c0_107, %c0_108] : memref<5x5x12x32xbf16, #tpu.memory_space<vmem>>, vector<1x1x12x32xbf16>
    %120 = vector.shape_cast %119 : vector<1x1x12x32xbf16> to vector<12x32xbf16>
    %cst_109 = arith.constant dense<0.000000e+00> : vector<64x32xf32>
    %121 = tpu.matmul %118, %120, %cst_109 {dimension_numbers = #tpu.dot_dimension_numbers<[1], [0], [0], [1], [0, 0, 1, 1], [], []>} : vector<64x12xbf16>, vector<12x32xbf16>, vector<64x32xf32> -> vector<64x32xf32>
    %122 = arith.addf %116, %121 : vector<64x32xf32>
    %123 = vector.extract_strided_slice %5 {offsets = [1, 2, 0], sizes = [8, 8, 12], strides = [1, 1, 1]} : vector<10x10x12xbf16> to vector<8x8x12xbf16>
    %124 = vector.shape_cast %123 : vector<8x8x12xbf16> to vector<64x12xbf16>
    %c3_110 = arith.constant 3 : index
    %c4_111 = arith.constant 4 : index
    %c0_112 = arith.constant 0 : index
    %c0_113 = arith.constant 0 : index
    %125 = vector.load %arg2[%c3_110, %c4_111, %c0_112, %c0_113] : memref<5x5x12x32xbf16, #tpu.memory_space<vmem>>, vector<1x1x12x32xbf16>
    %126 = vector.shape_cast %125 : vector<1x1x12x32xbf16> to vector<12x32xbf16>
    %cst_114 = arith.constant dense<0.000000e+00> : vector<64x32xf32>
    %127 = tpu.matmul %124, %126, %cst_114 {dimension_numbers = #tpu.dot_dimension_numbers<[1], [0], [0], [1], [0, 0, 1, 1], [], []>} : vector<64x12xbf16>, vector<12x32xbf16>, vector<64x32xf32> -> vector<64x32xf32>
    %128 = arith.addf %122, %127 : vector<64x32xf32>
    %129 = vector.extract_strided_slice %1 {offsets = [2, 0, 0], sizes = [8, 8, 12], strides = [1, 1, 1]} : vector<10x10x12xbf16> to vector<8x8x12xbf16>
    %130 = vector.shape_cast %129 : vector<8x8x12xbf16> to vector<64x12xbf16>
    %c4_115 = arith.constant 4 : index
    %c0_116 = arith.constant 0 : index
    %c0_117 = arith.constant 0 : index
    %c0_118 = arith.constant 0 : index
    %131 = vector.load %arg2[%c4_115, %c0_116, %c0_117, %c0_118] : memref<5x5x12x32xbf16, #tpu.memory_space<vmem>>, vector<1x1x12x32xbf16>
    %132 = vector.shape_cast %131 : vector<1x1x12x32xbf16> to vector<12x32xbf16>
    %cst_119 = arith.constant dense<0.000000e+00> : vector<64x32xf32>
    %133 = tpu.matmul %130, %132, %cst_119 {dimension_numbers = #tpu.dot_dimension_numbers<[1], [0], [0], [1], [0, 0, 1, 1], [], []>} : vector<64x12xbf16>, vector<12x32xbf16>, vector<64x32xf32> -> vector<64x32xf32>
    %134 = arith.addf %128, %133 : vector<64x32xf32>
    %135 = vector.extract_strided_slice %3 {offsets = [2, 0, 0], sizes = [8, 8, 12], strides = [1, 1, 1]} : vector<10x10x12xbf16> to vector<8x8x12xbf16>
    %136 = vector.shape_cast %135 : vector<8x8x12xbf16> to vector<64x12xbf16>
    %c4_120 = arith.constant 4 : index
    %c1_121 = arith.constant 1 : index
    %c0_122 = arith.constant 0 : index
    %c0_123 = arith.constant 0 : index
    %137 = vector.load %arg2[%c4_120, %c1_121, %c0_122, %c0_123] : memref<5x5x12x32xbf16, #tpu.memory_space<vmem>>, vector<1x1x12x32xbf16>
    %138 = vector.shape_cast %137 : vector<1x1x12x32xbf16> to vector<12x32xbf16>
    %cst_124 = arith.constant dense<0.000000e+00> : vector<64x32xf32>
    %139 = tpu.matmul %136, %138, %cst_124 {dimension_numbers = #tpu.dot_dimension_numbers<[1], [0], [0], [1], [0, 0, 1, 1], [], []>} : vector<64x12xbf16>, vector<12x32xbf16>, vector<64x32xf32> -> vector<64x32xf32>
    %140 = arith.addf %134, %139 : vector<64x32xf32>
    %141 = vector.extract_strided_slice %1 {offsets = [2, 1, 0], sizes = [8, 8, 12], strides = [1, 1, 1]} : vector<10x10x12xbf16> to vector<8x8x12xbf16>
    %142 = vector.shape_cast %141 : vector<8x8x12xbf16> to vector<64x12xbf16>
    %c4_125 = arith.constant 4 : index
    %c2_126 = arith.constant 2 : index
    %c0_127 = arith.constant 0 : index
    %c0_128 = arith.constant 0 : index
    %143 = vector.load %arg2[%c4_125, %c2_126, %c0_127, %c0_128] : memref<5x5x12x32xbf16, #tpu.memory_space<vmem>>, vector<1x1x12x32xbf16>
    %144 = vector.shape_cast %143 : vector<1x1x12x32xbf16> to vector<12x32xbf16>
    %cst_129 = arith.constant dense<0.000000e+00> : vector<64x32xf32>
    %145 = tpu.matmul %142, %144, %cst_129 {dimension_numbers = #tpu.dot_dimension_numbers<[1], [0], [0], [1], [0, 0, 1, 1], [], []>} : vector<64x12xbf16>, vector<12x32xbf16>, vector<64x32xf32> -> vector<64x32xf32>
    %146 = arith.addf %140, %145 : vector<64x32xf32>
    %147 = vector.extract_strided_slice %3 {offsets = [2, 1, 0], sizes = [8, 8, 12], strides = [1, 1, 1]} : vector<10x10x12xbf16> to vector<8x8x12xbf16>
    %148 = vector.shape_cast %147 : vector<8x8x12xbf16> to vector<64x12xbf16>
    %c4_130 = arith.constant 4 : index
    %c3_131 = arith.constant 3 : index
    %c0_132 = arith.constant 0 : index
    %c0_133 = arith.constant 0 : index
    %149 = vector.load %arg2[%c4_130, %c3_131, %c0_132, %c0_133] : memref<5x5x12x32xbf16, #tpu.memory_space<vmem>>, vector<1x1x12x32xbf16>
    %150 = vector.shape_cast %149 : vector<1x1x12x32xbf16> to vector<12x32xbf16>
    %cst_134 = arith.constant dense<0.000000e+00> : vector<64x32xf32>
    %151 = tpu.matmul %148, %150, %cst_134 {dimension_numbers = #tpu.dot_dimension_numbers<[1], [0], [0], [1], [0, 0, 1, 1], [], []>} : vector<64x12xbf16>, vector<12x32xbf16>, vector<64x32xf32> -> vector<64x32xf32>
    %152 = arith.addf %146, %151 : vector<64x32xf32>
    %153 = vector.extract_strided_slice %1 {offsets = [2, 2, 0], sizes = [8, 8, 12], strides = [1, 1, 1]} : vector<10x10x12xbf16> to vector<8x8x12xbf16>
    %154 = vector.shape_cast %153 : vector<8x8x12xbf16> to vector<64x12xbf16>
    %c4_135 = arith.constant 4 : index
    %c4_136 = arith.constant 4 : index
    %c0_137 = arith.constant 0 : index
    %c0_138 = arith.constant 0 : index
    %155 = vector.load %arg2[%c4_135, %c4_136, %c0_137, %c0_138] : memref<5x5x12x32xbf16, #tpu.memory_space<vmem>>, vector<1x1x12x32xbf16>
    %156 = vector.shape_cast %155 : vector<1x1x12x32xbf16> to vector<12x32xbf16>
    %cst_139 = arith.constant dense<0.000000e+00> : vector<64x32xf32>
    %157 = tpu.matmul %154, %156, %cst_139 {dimension_numbers = #tpu.dot_dimension_numbers<[1], [0], [0], [1], [0, 0, 1, 1], [], []>} : vector<64x12xbf16>, vector<12x32xbf16>, vector<64x32xf32> -> vector<64x32xf32>
    %158 = arith.addf %152, %157 : vector<64x32xf32>
    %c0_140 = arith.constant 0 : index
    %c0_141 = arith.constant 0 : index
    %159 = vector.load %arg3[%c0_140, %c0_141] : memref<1x32xf32, #tpu.memory_space<vmem>>, vector<1x32xf32>
    %160 = vector.broadcast %159 : vector<1x32xf32> to vector<64x32xf32>
    %161 = arith.addf %158, %160 : vector<64x32xf32>
    %cst_142 = arith.constant 0.000000e+00 : f32
    %162 = vector.broadcast %cst_142 : f32 to vector<64x32xf32>
    %163 = arith.maximumf %161, %162 : vector<64x32xf32>
    %164 = vector.shape_cast %163 : vector<64x32xf32> to vector<1x8x8x32xf32>
    %165 = arith.truncf %164 : vector<1x8x8x32xf32> to vector<1x8x8x32xbf16>
    %c0_143 = arith.constant 0 : index
    %c0_144 = arith.constant 0 : index
    %c0_145 = arith.constant 0 : index
    %c0_146 = arith.constant 0 : index
    %166 = vector.load %arg4[%c0_143, %c0_144, %c0_145, %c0_146] : memref<1x8x8x32xbf16, #tpu.memory_space<vmem>>, vector<1x8x8x32xbf16>
    tpu.vector_store %arg4[%c0_143, %c0_144, %c0_145, %c0_146], %165 {strides = array<i32>} : memref<1x8x8x32xbf16, #tpu.memory_space<vmem>>, vector<1x8x8x32xbf16>,
    return
  }
  func.func @transform_0(%arg0: i32) -> (i32, i32, i32, i32, i32) {
    %c0_i32 = arith.constant 0 : i32
    %c0_i32_0 = arith.constant 0 : i32
    %c0_i32_1 = arith.constant 0 : i32
    %c0_i32_2 = arith.constant 0 : i32
    %c0_i32_3 = arith.constant 0 : i32
    return %arg0, %c0_i32, %c0_i32_0, %c0_i32_1, %c0_i32_2 : i32, i32, i32, i32, i32
  }
  func.func @transform_1(%arg0: i32) -> (i32, i32, i32, i32) {
    %c0_i32 = arith.constant 0 : i32
    %c0_i32_0 = arith.constant 0 : i32
    %c0_i32_1 = arith.constant 0 : i32
    %c0_i32_2 = arith.constant 0 : i32
    %c0_i32_3 = arith.constant 0 : i32
    return %c0_i32, %c0_i32_0, %c0_i32_1, %c0_i32_2 : i32, i32, i32, i32
  }
  func.func @transform_2(%arg0: i32) -> (i32, i32) {
    %c0_i32 = arith.constant 0 : i32
    %c0_i32_0 = arith.constant 0 : i32
    %c0_i32_1 = arith.constant 0 : i32
    return %c0_i32, %c0_i32_0 : i32, i32
  }
  func.func @transform_3(%arg0: i32) -> (i32, i32, i32, i32) {
    %c0_i32 = arith.constant 0 : i32
    %c0_i32_0 = arith.constant 0 : i32
    %c0_i32_1 = arith.constant 0 : i32
    %c0_i32_2 = arith.constant 0 : i32
    return %arg0, %c0_i32, %c0_i32_0, %c0_i32_1 : i32, i32, i32, i32
  }
}

</mosaic_0001>

<llo_original>
// kernel: tpu_custom_call.1
$region0: #{tpu_custom_call.1}
  #allocation0 [shape = 'u32[]', space=smem, size = 0x4, offset = 0x4, fixed_abs, tag = 'smem constant byte address 0x4 - core index']
  #allocation1 [shape = 'u32[72,128]{1,0:T(1,128)}', space=vmem, size = 0x9000, scoped, tag = 'internal scratch']
  %s0 = inlined_call_operand.vmem [shape: bf16[2,4,10,10,12], index: 0, kind: input, shape index: {}]
  %s1 = inlined_call_operand.vmem [shape: bf16[5,5,12,32], index: 1, kind: input, shape index: {}]
  %s2 = inlined_call_operand.vmem [shape: f32[1,32], index: 2, kind: input, shape index: {}]
  %s3 = inlined_call_operand.hbm [shape: bf16[2,8,8,32], index: 3, kind: output, shape index: {}]
  %s4 = sld [smem:[#allocation0]]
  $region45: #{tpu_custom_call.1} parent=0
    _
  %s6 = ssub.s32 1, %s4
  %s7 = scalar_select 0, %s6, %s4
  $region1: #{tpu_custom_call.1} parent=0
    #allocation2 [shape = 'u8[32768]{0}', space=vmem, size = 0x8000, scoped, tag = 'output window, operand 0']
    #allocation3 [shape = 's32[2]{0}', space=sflag, size = 0x8, scoped, tag = 'scoped memory for tpu_custom_call.1']
    %8 = vsyncpa [#allocation3], 0
    %s9 = scalar_lea.sflag [#allocation3], 1
    %10 = vsyncpa %s9, 0
    loop: start=0, step=1, limit=4
    $region2: #{tpu_custom_call.1} parent=1 // loop_pre_header
      _
    $region3: #{tpu_custom_call.1} parent=1 // loop_header
      %s12 = sphi 0, %s16
      %p13 = scmp.ge.s32.totalorder %s12, 4
      %s22 = sphi 0, %s24
      %s25 = sphi 0, %s22
      %s26 = sphi 0, %s25
      %s42 = sphi 0, %s26
      %s46 = sphi 0, %s46
      %s48 = sphi 0, %s46
      %s49 = sphi 0, %s48
      %s63 = sphi 0, %s49
      %s67 = sphi 0, %s67
      %s69 = sphi 0, %s67
      %s70 = sphi 0, %s69
      %s84 = sphi 0, %s70
      %s90 = sphi 0, %s92
      %s93 = sphi 0, %s90
      %s94 = sphi 0, %s93
      %s110 = sphi 0, %s94
    $region4: #{tpu_custom_call.1} parent=1 // loop_header_branch
      %15 = sbr.rel (%p13) target = $region8
    $region5: #{tpu_custom_call.1} parent=1 // loop_body
      %s17 = ssub.s32 %s12, 1
      %s18 = ssub.s32 %s12, 2
      %s19 = sadd.s32 %s12, 1
      %s20 = ssub.s32 %s12, %s19
      %p21 = scmp.eq.s32.totalorder %s20, 0
      %s23 = sadd.s32 %s22, 1
      %s24 = scalar_select %p21, %s22, %s23
      %p27 = pneg %p21
      %p28 = scmp.eq.s32.totalorder %s12, 1
      %p29 = por %p27, %p28
      %p30 = scmp.ne.s32.totalorder %s22, %s25
      %p31 = scmp.eq.s32.totalorder %s12, 0
      %p32 = por %p30, %p31
      %p33 = scmp.ne.s32.totalorder %s22, %s25
      %p34 = scmp.eq.s32.totalorder %s17, 1
      %p35 = por %p33, %p34
      %p36 = scmp.ne.s32.totalorder %s25, %s26
      %p37 = scmp.eq.s32.totalorder %s17, 0
      %p38 = por %p36, %p37
      %p39 = scmp.ne.s32.totalorder %s25, %s26
      %p40 = scmp.eq.s32.totalorder %s18, 1
      %p41 = por %p39, %p40
      %p43 = scmp.ne.s32.totalorder %s26, %s42
      %p44 = scmp.eq.s32.totalorder %s18, 0
      %p45 = por %p43, %p44
      %s47 = sadd.s32 %s46, 1
      %p50 = scmp.eq.s32.totalorder %s12, 1
      %p51 = scmp.ne.s32.totalorder %s46, %s48
      %p52 = scmp.eq.s32.totalorder %s12, 0
      %p53 = por %p51, %p52
      %p54 = scmp.ne.s32.totalorder %s46, %s48
      %p55 = scmp.eq.s32.totalorder %s17, 1
      %p56 = por %p54, %p55
      %p57 = scmp.ne.s32.totalorder %s48, %s49
      %p58 = scmp.eq.s32.totalorder %s17, 0
      %p59 = por %p57, %p58
      %p60 = scmp.ne.s32.totalorder %s48, %s49
      %p61 = scmp.eq.s32.totalorder %s18, 1
      %p62 = por %p60, %p61
      %p64 = scmp.ne.s32.totalorder %s49, %s63
      %p65 = scmp.eq.s32.totalorder %s18, 0
      %p66 = por %p64, %p65
      %s68 = sadd.s32 %s67, 1
      %p71 = scmp.eq.s32.totalorder %s12, 1
      %p72 = scmp.ne.s32.totalorder %s67, %s69
      %p73 = scmp.eq.s32.totalorder %s12, 0
      %p74 = por %p72, %p73
      %p75 = scmp.ne.s32.totalorder %s67, %s69
      %p76 = scmp.eq.s32.totalorder %s17, 1
      %p77 = por %p75, %p76
      %p78 = scmp.ne.s32.totalorder %s69, %s70
      %p79 = scmp.eq.s32.totalorder %s17, 0
      %p80 = por %p78, %p79
      %p81 = scmp.ne.s32.totalorder %s69, %s70
      %p82 = scmp.eq.s32.totalorder %s18, 1
      %p83 = por %p81, %p82
      %p85 = scmp.ne.s32.totalorder %s70, %s84
      %p86 = scmp.eq.s32.totalorder %s18, 0
      %p87 = por %p85, %p86
      %s88 = ssub.s32 %s12, %s19
      %p89 = scmp.eq.s32.totalorder %s88, 0
      %s91 = sadd.s32 %s90, 1
      %s92 = scalar_select %p89, %s90, %s91
      %p95 = pneg %p89
      %p96 = scmp.eq.s32.totalorder %s12, 1
      %p97 = por %p95, %p96
      %p98 = scmp.ne.s32.totalorder %s90, %s93
      %p99 = scmp.eq.s32.totalorder %s12, 0
      %p100 = por %p98, %p99
      %p101 = scmp.ne.s32.totalorder %s90, %s93
      %p102 = scmp.eq.s32.totalorder %s17, 1
      %p103 = por %p101, %p102
      %p104 = scmp.ne.s32.totalorder %s93, %s94
      %p105 = scmp.eq.s32.totalorder %s17, 0
      %p106 = por %p104, %p105
      %p107 = scmp.ne.s32.totalorder %s93, %s94
      %p108 = scmp.eq.s32.totalorder %s18, 1
      %p109 = por %p107, %p108
      %p111 = scmp.ne.s32.totalorder %s94, %s110
      %p112 = scmp.eq.s32.totalorder %s18, 0
      %p113 = por %p111, %p112
      %p114 = scmp.le.s32.totalorder 1, %s12
      %p115 = scmp.lt.s32.totalorder %s12, 3
      %p116 = pnand %p114, %p115
      %p117 = pneg %p116
      // Predicated region
      $region9: #{tpu_custom_call.1} parent=5 // pred_check
        _
      $region10: #{tpu_custom_call.1} parent=5 // pred_check_branch
        %119 = sbr.rel (%p116) target = $region12
      $region11: #{tpu_custom_call.1} parent=5 // pred_region
        %s120 = ssub.s32 %s12, 1
        // Predicated region
        $region13: #{tpu_custom_call.1} parent=11 // pred_check
          %p121 = pneg %p59
        $region14: #{tpu_custom_call.1} parent=11 // pred_check_branch
          %123 = sbr.rel (%p121) target = $region16
        $region15: #{tpu_custom_call.1} parent=11 // pred_region
          _
        $region16: #{tpu_custom_call.1} parent=11 // pred_fallthru
          _
        // Predicated region
        $region17: #{tpu_custom_call.1} parent=11 // pred_check
          %p124 = pneg %p80
        $region18: #{tpu_custom_call.1} parent=11 // pred_check_branch
          %126 = sbr.rel (%p124) target = $region20
        $region19: #{tpu_custom_call.1} parent=11 // pred_region
          _
        $region20: #{tpu_custom_call.1} parent=11 // pred_fallthru
          _
      $region12: #{tpu_custom_call.1} parent=5 // pred_fallthru
        _
      %p127 = scmp.lt.s32.totalorder %s12, 2
      // Predicated region
      $region21: #{tpu_custom_call.1} parent=5 // pred_check
        %p128 = pneg %p127
      $region22: #{tpu_custom_call.1} parent=5 // pred_check_branch
        %130 = sbr.rel (%p128) target = $region24
      $region23: #{tpu_custom_call.1} parent=5 // pred_region
        // Predicated region
        $region25: #{tpu_custom_call.1} parent=23 // pred_check
          %p131 = pneg %p32
        $region26: #{tpu_custom_call.1} parent=23 // pred_check_branch
          %133 = sbr.rel (%p131) target = $region28
        $region27: #{tpu_custom_call.1} parent=23 // pred_region
          %p134 = scmp.lt.s32.totalorder %s12, 1
          %s135 = scalar_select %p134, %s12, 1
          %s136 = smul.addr %s135, 80
          %s137 = smul.addr %s136, 4
          %s138 = scalar_lea.vmem %s0, %s137
        $region28: #{tpu_custom_call.1} parent=23 // pred_fallthru
          _
      $region24: #{tpu_custom_call.1} parent=5 // pred_fallthru
        _
      %p139 = scmp.le.s32.totalorder 1, %s12
      %p140 = scmp.lt.s32.totalorder %s12, 3
      %p141 = pnand %p139, %p140
      %p142 = pneg %p141
      // Predicated region
      $region29: #{tpu_custom_call.1} parent=5 // pred_check
        _
      $region30: #{tpu_custom_call.1} parent=5 // pred_check_branch
        %144 = sbr.rel (%p141) target = $region32
      $region31: #{tpu_custom_call.1} parent=5 // pred_region
        %s145 = ssub.s32 %s12, 1
        %p146 = scmp.lt.s32.totalorder %s17, 1
        %s147 = scalar_select %p146, %s17, 1
        %s148 = smul.addr %s147, 80
        %s149 = smul.addr %s148, 4
        %s150 = scalar_lea.vmem %s0, %s149
        %p151 = pneg %p38
        %p152 = pneg %p35
        %p153 = pneg %p59
        %p154 = pneg %p56
        %p155 = pneg %p80
        %p156 = pneg %p77
        %p157 = pneg %p106
        %p158 = pneg %p103
        %s159 = sand.u32 %s93, 1
        %s160 = scalar_lea.sflag [#allocation3], %s159
        %s161 = sand.u32 %s93, 1
        %s162 = smul.addr %s161, 32
        %s163 = scalar_lea.vmem [#allocation2], %s162
        %p164 = scmp.lt.s32.totalorder %s17, 1
        %s165 = scalar_select %p164, %s17, 1
        %s166 = smul.addr %s165, 80
        %s167 = smul.addr %s166, 4
        %s168 = scalar_lea.vmem %s0, %s167
        %v170 = vld [vmem:[%s168] sm:$0xf]
        %v171 = vld [vmem:[%s168 + $0x4] sm:$0x1]
        %v172 = vld [vmem:[%s168 + $0x8] sm:$0xf]
        %v173 = vld [vmem:[%s168 + $0xc] sm:$0x1]
        %v174 = vld [vmem:[%s168 + $0x10] sm:$0xf]
        %v175 = vld [vmem:[%s168 + $0x14] sm:$0x1]
        %v176 = vld [vmem:[%s168 + $0x18] sm:$0xf]
        %v177 = vld [vmem:[%s168 + $0x1c] sm:$0x1]
        %v178 = vld [vmem:[%s168 + $0x20] sm:$0xf]
        %v179 = vld [vmem:[%s168 + $0x24] sm:$0x1]
        %v180 = vld [vmem:[%s168 + $0x28] sm:$0xf]
        %v181 = vld [vmem:[%s168 + $0x2c] sm:$0x1]
        %v182 = vld [vmem:[%s168 + $0x30] sm:$0xf]
        %v183 = vld [vmem:[%s168 + $0x34] sm:$0x1]
        %v184 = vld [vmem:[%s168 + $0x38] sm:$0xf]
        %v185 = vld [vmem:[%s168 + $0x3c] sm:$0x1]
        %v186 = vld [vmem:[%s168 + $0x40] sm:$0xf]
        %v187 = vld [vmem:[%s168 + $0x44] sm:$0x1]
        %v188 = vld [vmem:[%s168 + $0x48] sm:$0xf]
        %v189 = vld [vmem:[%s168 + $0x4c] sm:$0x1]
        %s190 = scalar_lea.vmem %s168, 80
        %v191 = vld [vmem:[%s190] sm:$0xf]
        %v192 = vld [vmem:[%s190 + $0x4] sm:$0x1]
        %v193 = vld [vmem:[%s190 + $0x8] sm:$0xf]
        %v194 = vld [vmem:[%s190 + $0xc] sm:$0x1]
        %v195 = vld [vmem:[%s190 + $0x10] sm:$0xf]
        %v196 = vld [vmem:[%s190 + $0x14] sm:$0x1]
        %v197 = vld [vmem:[%s190 + $0x18] sm:$0xf]
        %v198 = vld [vmem:[%s190 + $0x1c] sm:$0x1]
        %v199 = vld [vmem:[%s190 + $0x20] sm:$0xf]
        %v200 = vld [vmem:[%s190 + $0x24] sm:$0x1]
        %v201 = vld [vmem:[%s190 + $0x28] sm:$0xf]
        %v202 = vld [vmem:[%s190 + $0x2c] sm:$0x1]
        %v203 = vld [vmem:[%s190 + $0x30] sm:$0xf]
        %v204 = vld [vmem:[%s190 + $0x34] sm:$0x1]
        %v205 = vld [vmem:[%s190 + $0x38] sm:$0xf]
        %v206 = vld [vmem:[%s190 + $0x3c] sm:$0x1]
        %v207 = vld [vmem:[%s190 + $0x40] sm:$0xf]
        %v208 = vld [vmem:[%s190 + $0x44] sm:$0x1]
        %v209 = vld [vmem:[%s190 + $0x48] sm:$0xf]
        %v210 = vld [vmem:[%s190 + $0x4c] sm:$0x1]
        %s211 = scalar_lea.vmem %s168, 160
        %v212 = vld [vmem:[%s211] sm:$0xf]
        %v213 = vld [vmem:[%s211 + $0x4] sm:$0x1]
        %v214 = vld [vmem:[%s211 + $0x8] sm:$0xf]
        %v215 = vld [vmem:[%s211 + $0xc] sm:$0x1]
        %v216 = vld [vmem:[%s211 + $0x10] sm:$0xf]
        %v217 = vld [vmem:[%s211 + $0x14] sm:$0x1]
        %v218 = vld [vmem:[%s211 + $0x18] sm:$0xf]
        %v219 = vld [vmem:[%s211 + $0x1c] sm:$0x1]
        %v220 = vld [vmem:[%s211 + $0x20] sm:$0xf]
        %v221 = vld [vmem:[%s211 + $0x24] sm:$0x1]
        %v222 = vld [vmem:[%s211 + $0x28] sm:$0xf]
        %v223 = vld [vmem:[%s211 + $0x2c] sm:$0x1]
        %v224 = vld [vmem:[%s211 + $0x30] sm:$0xf]
        %v225 = vld [vmem:[%s211 + $0x34] sm:$0x1]
        %v226 = vld [vmem:[%s211 + $0x38] sm:$0xf]
        %v227 = vld [vmem:[%s211 + $0x3c] sm:$0x1]
        %v228 = vld [vmem:[%s211 + $0x40] sm:$0xf]
        %v229 = vld [vmem:[%s211 + $0x44] sm:$0x1]
        %s230 = scalar_lea.vmem %s168, 240
        %v231 = vld [vmem:[%s230] sm:$0xf]
        %v232 = vld [vmem:[%s230 + $0x4] sm:$0x1]
        %v233 = vld [vmem:[%s230 + $0x8] sm:$0xf]
        %v234 = vld [vmem:[%s230 + $0xc] sm:$0x1]
        %v235 = vld [vmem:[%s230 + $0x10] sm:$0xf]
        %v236 = vld [vmem:[%s230 + $0x14] sm:$0x1]
        %v237 = vld [vmem:[%s230 + $0x18] sm:$0xf]
        %v238 = vld [vmem:[%s230 + $0x1c] sm:$0x1]
        %v239 = vld [vmem:[%s230 + $0x20] sm:$0xf]
        %v240 = vld [vmem:[%s230 + $0x24] sm:$0x1]
        %v241 = vld [vmem:[%s230 + $0x28] sm:$0xf]
        %v242 = vld [vmem:[%s230 + $0x2c] sm:$0x1]
        %v243 = vld [vmem:[%s230 + $0x30] sm:$0xf]
        %v244 = vld [vmem:[%s230 + $0x34] sm:$0x1]
        %v245 = vld [vmem:[%s230 + $0x38] sm:$0xf]
        %v246 = vld [vmem:[%s230 + $0x3c] sm:$0x1]
        %v247 = vld [vmem:[%s230 + $0x40] sm:$0xf]
        %v248 = vld [vmem:[%s230 + $0x44] sm:$0x1]
        %v249 = vld [vmem:[%s1] sm:$0xf]
        %v250 = vld [vmem:[%s1 + $0x4] sm:$0x3]
        %s251 = scalar_lea.vmem %s1, 8
        %v252 = vld [vmem:[%s251] sm:$0xf]
        %v253 = vld [vmem:[%s251 + $0x4] sm:$0x3]
        %v262 = vunpack.c.l.b16 %v191
        %v263 = vunpack.c.l.b16 %v193
        %v264 = vunpack.c.l.b16 %v195
        %v265 = vunpack.c.l.b16 %v197
        %v266 = vunpack.c.l.b16 %v199
        %v267 = vunpack.c.l.b16 %v201
        %v268 = vunpack.c.l.b16 %v203
        %v269 = vunpack.c.l.b16 %v205
        %v270 = vpack.c.b16 %v263, %v262
        %v271 = vpack.c.b16 %v265, %v264
        %v272 = vpack.c.b16 %v267, %v266
        %v273 = vpack.c.b16 %v269, %v268
        %v276 = vunpack.c.l.b16 %v252
        %v277 = vunpack.c.l.b16 %v253
        %v278 = vpack.c.b16 %v277, %v276
        %vm279 = vcmask 97280
        %v281 = vsel %vm279, %v270, 0
        %v284 = vsel %vm279, %v271, 0
        %v287 = vsel %vm279, %v272, 0
        %v290 = vsel %vm279, %v273, 0
        %vm292 = vcmask 1045504
        %v294 = vsel %vm292, %v278, 0
        %296 = vmatpush.bf16.msra.mxu0 0
        %297 = vmatpush.bf16.msra.mxu0 0
        %298 = vmatpush.bf16.msra.mxu0 0
        %299 = vmatpush.bf16.msra.mxu0 0
        %300 = vmatpush.bf16.msra.mxu0 0
        %301 = vmatpush.bf16.msra.mxu0 0
        %302 = vmatpush.bf16.msra.mxu0 0
        %303 = vmatpush.bf16.msra.mxu0 %v294
        %304 = vmatmul.bf16.gmra.mxu0 %v281
        %v305 = vpop.f32.mrf.mxu0
        %v306 = vadd.f32 0.0, %v305
        %v307 = vpop.f32.mrf.mxu0
        %v308 = vadd.f32 0.0, %v307
        %309 = vmatmul.bf16.gmra.mxu0 %v284
        %v310 = vpop.f32.mrf.mxu0
        %v311 = vadd.f32 0.0, %v310
        %v312 = vpop.f32.mrf.mxu0
        %v313 = vadd.f32 0.0, %v312
        %314 = vmatmul.bf16.gmra.mxu0 %v287
        %v315 = vpop.f32.mrf.mxu0
        %v316 = vadd.f32 0.0, %v315
        %v317 = vpop.f32.mrf.mxu0
        %v318 = vadd.f32 0.0, %v317
        %319 = vmatmul.bf16.gmra.mxu0 %v290
        %v320 = vpop.f32.mrf.mxu0
        %v321 = vadd.f32 0.0, %v320
        %v322 = vpop.f32.mrf.mxu0
        %v323 = vadd.f32 0.0, %v322
        %324 = vdwg.mxu0
        %v333 = vunpack.c.l.b16 %v170
        %v334 = vunpack.c.l.b16 %v172
        %v335 = vunpack.c.l.b16 %v174
        %v336 = vunpack.c.l.b16 %v176
        %v337 = vunpack.c.l.b16 %v178
        %v338 = vunpack.c.l.b16 %v180
        %v339 = vunpack.c.l.b16 %v182
        %v340 = vunpack.c.l.b16 %v184
        %v341 = vpack.c.b16 %v334, %v333
        %v342 = vpack.c.b16 %v336, %v335
        %v343 = vpack.c.b16 %v338, %v337
        %v344 = vpack.c.b16 %v340, %v339
        %v347 = vunpack.c.l.b16 %v249
        %v348 = vunpack.c.l.b16 %v250
        %v349 = vpack.c.b16 %v348, %v347
        %v351 = vsel %vm279, %v341, 0
        %v354 = vsel %vm279, %v342, 0
        %v357 = vsel %vm279, %v343, 0
        %v360 = vsel %vm279, %v344, 0
        %v363 = vsel %vm292, %v349, 0
        %365 = vmatpush.bf16.msra.mxu0 0
        %366 = vmatpush.bf16.msra.mxu0 0
        %367 = vmatpush.bf16.msra.mxu0 0
        %368 = vmatpush.bf16.msra.mxu0 0
        %369 = vmatpush.bf16.msra.mxu0 0
        %370 = vmatpush.bf16.msra.mxu0 0
        %371 = vmatpush.bf16.msra.mxu0 0
        %372 = vmatpush.bf16.msra.mxu0 %v363
        %373 = vmatmul.bf16.gmra.mxu0 %v351
        %v374 = vpop.f32.mrf.mxu0
        %v375 = vadd.f32 %v306, %v374
        %v376 = vpop.f32.mrf.mxu0
        %v377 = vadd.f32 %v308, %v376
        %378 = vmatmul.bf16.gmra.mxu0 %v354
        %v379 = vpop.f32.mrf.mxu0
        %v380 = vadd.f32 %v311, %v379
        %v381 = vpop.f32.mrf.mxu0
        %v382 = vadd.f32 %v313, %v381
        %383 = vmatmul.bf16.gmra.mxu0 %v357
        %v384 = vpop.f32.mrf.mxu0
        %v385 = vadd.f32 %v316, %v384
        %v386 = vpop.f32.mrf.mxu0
        %v387 = vadd.f32 %v318, %v386
        %388 = vmatmul.bf16.gmra.mxu0 %v360
        %v389 = vpop.f32.mrf.mxu0
        %v390 = vadd.f32 %v321, %v389
        %v391 = vpop.f32.mrf.mxu0
        %v392 = vadd.f32 %v323, %v391
        %393 = vdwg.mxu0
        %vm394 = vsmask.f32 3328
        %vm395 = vsmask.f32 7440
        %vm396 = vmor %vm394, %vm395
        %v398 = vshrl.u32 %v170, 16
        %v400 = vrot.slane %v398, 4
        %v401 = vshll.u32 %v170, 16
        %v403 = vrot.slane %v401, 5
        %v404 = vor.u32 %v400, %v403
        %v405 = vrot.slane %v404, 4
        %v407 = vshll.u32 %v171, 16
        %v409 = vrot.slane %v407, 5
        %v410 = vsel %vm396, %v405, %v409
        %v412 = vshrl.u32 %v172, 16
        %v414 = vrot.slane %v412, 4
        %v415 = vshll.u32 %v172, 16
        %v417 = vrot.slane %v415, 5
        %v418 = vor.u32 %v414, %v417
        %v419 = vrot.slane %v418, 4
        %v421 = vshll.u32 %v173, 16
        %v423 = vrot.slane %v421, 5
        %v424 = vsel %vm396, %v419, %v423
        %v426 = vshrl.u32 %v174, 16
        %v428 = vrot.slane %v426, 4
        %v429 = vshll.u32 %v174, 16
        %v431 = vrot.slane %v429, 5
        %v432 = vor.u32 %v428, %v431
        %v433 = vrot.slane %v432, 4
        %v435 = vshll.u32 %v175, 16
        %v437 = vrot.slane %v435, 5
        %v438 = vsel %vm396, %v433, %v437
        %v440 = vshrl.u32 %v176, 16
        %v442 = vrot.slane %v440, 4
        %v443 = vshll.u32 %v176, 16
        %v445 = vrot.slane %v443, 5
        %v446 = vor.u32 %v442, %v445
        %v447 = vrot.slane %v446, 4
        %v449 = vshll.u32 %v177, 16
        %v451 = vrot.slane %v449, 5
        %v452 = vsel %vm396, %v447, %v451
        %v454 = vshrl.u32 %v178, 16
        %v456 = vrot.slane %v454, 4
        %v457 = vshll.u32 %v178, 16
        %v459 = vrot.slane %v457, 5
        %v460 = vor.u32 %v456, %v459
        %v461 = vrot.slane %v460, 4
        %v463 = vshll.u32 %v179, 16
        %v465 = vrot.slane %v463, 5
        %v466 = vsel %vm396, %v461, %v465
        %v468 = vshrl.u32 %v180, 16
        %v470 = vrot.slane %v468, 4
        %v471 = vshll.u32 %v180, 16
        %v473 = vrot.slane %v471, 5
        %v474 = vor.u32 %v470, %v473
        %v475 = vrot.slane %v474, 4
        %v477 = vshll.u32 %v181, 16
        %v479 = vrot.slane %v477, 5
        %v480 = vsel %vm396, %v475, %v479
        %v482 = vshrl.u32 %v182, 16
        %v484 = vrot.slane %v482, 4
        %v485 = vshll.u32 %v182, 16
        %v487 = vrot.slane %v485, 5
        %v488 = vor.u32 %v484, %v487
        %v489 = vrot.slane %v488, 4
        %v491 = vshll.u32 %v183, 16
        %v493 = vrot.slane %v491, 5
        %v494 = vsel %vm396, %v489, %v493
        %v496 = vshrl.u32 %v184, 16
        %v498 = vrot.slane %v496, 4
        %v499 = vshll.u32 %v184, 16
        %v501 = vrot.slane %v499, 5
        %v502 = vor.u32 %v498, %v501
        %v503 = vrot.slane %v502, 4
        %v505 = vshll.u32 %v185, 16
        %v507 = vrot.slane %v505, 5
        %v508 = vsel %vm396, %v503, %v507
        %s509 = scalar_lea.vmem %s1, 16
        %v510 = vld [vmem:[%s509] sm:$0xf]
        %v511 = vld [vmem:[%s509 + $0x4] sm:$0x3]
        %v512 = vunpack.c.l.b16 %v410
        %v513 = vunpack.c.l.b16 %v424
        %v514 = vunpack.c.l.b16 %v438
        %v515 = vunpack.c.l.b16 %v452
        %v516 = vunpack.c.l.b16 %v466
        %v517 = vunpack.c.l.b16 %v480
        %v518 = vunpack.c.l.b16 %v494
        %v519 = vunpack.c.l.b16 %v508
        %v520 = vpack.c.b16 %v513, %v512
        %v521 = vpack.c.b16 %v515, %v514
        %v522 = vpack.c.b16 %v517, %v516
        %v523 = vpack.c.b16 %v519, %v518
        %v526 = vunpack.c.l.b16 %v510
        %v527 = vunpack.c.l.b16 %v511
        %v528 = vpack.c.b16 %v527, %v526
        %v530 = vsel %vm279, %v520, 0
        %v533 = vsel %vm279, %v521, 0
        %v536 = vsel %vm279, %v522, 0
        %v539 = vsel %vm279, %v523, 0
        %v542 = vsel %vm292, %v528, 0
        %544 = vmatpush.bf16.msra.mxu0 0
        %545 = vmatpush.bf16.msra.mxu0 0
        %546 = vmatpush.bf16.msra.mxu0 0
        %547 = vmatpush.bf16.msra.mxu0 0
        %548 = vmatpush.bf16.msra.mxu0 0
        %549 = vmatpush.bf16.msra.mxu0 0
        %550 = vmatpush.bf16.msra.mxu0 0
        %551 = vmatpush.bf16.msra.mxu0 %v542
        %552 = vmatmul.bf16.gmra.mxu0 %v530
        %v553 = vpop.f32.mrf.mxu0
        %v554 = vadd.f32 0.0, %v553
        %v555 = vpop.f32.mrf.mxu0
        %v556 = vadd.f32 0.0, %v555
        %557 = vmatmul.bf16.gmra.mxu0 %v533
        %v558 = vpop.f32.mrf.mxu0
        %v559 = vadd.f32 0.0, %v558
        %v560 = vpop.f32.mrf.mxu0
        %v561 = vadd.f32 0.0, %v560
        %562 = vmatmul.bf16.gmra.mxu0 %v536
        %v563 = vpop.f32.mrf.mxu0
        %v564 = vadd.f32 0.0, %v563
        %v565 = vpop.f32.mrf.mxu0
        %v566 = vadd.f32 0.0, %v565
        %567 = vmatmul.bf16.gmra.mxu0 %v539
        %v568 = vpop.f32.mrf.mxu0
        %v569 = vadd.f32 0.0, %v568
        %v570 = vpop.f32.mrf.mxu0
        %v571 = vadd.f32 0.0, %v570
        %572 = vdwg.mxu0
        %v573 = vadd.f32 %v375, %v554
        %v574 = vadd.f32 %v377, %v556
        %v575 = vadd.f32 %v380, %v559
        %v576 = vadd.f32 %v382, %v561
        %v577 = vadd.f32 %v385, %v564
        %v578 = vadd.f32 %v387, %v566
        %v579 = vadd.f32 %v390, %v569
        %v580 = vadd.f32 %v392, %v571
        %v582 = vshrl.u32 %v191, 16
        %v584 = vrot.slane %v582, 4
        %v585 = vshll.u32 %v191, 16
        %v587 = vrot.slane %v585, 5
        %v588 = vor.u32 %v584, %v587
        %v589 = vrot.slane %v588, 4
        %v591 = vshll.u32 %v192, 16
        %v593 = vrot.slane %v591, 5
        %v594 = vsel %vm396, %v589, %v593
        %v596 = vshrl.u32 %v193, 16
        %v598 = vrot.slane %v596, 4
        %v599 = vshll.u32 %v193, 16
        %v601 = vrot.slane %v599, 5
        %v602 = vor.u32 %v598, %v601
        %v603 = vrot.slane %v602, 4
        %v605 = vshll.u32 %v194, 16
        %v607 = vrot.slane %v605, 5
        %v608 = vsel %vm396, %v603, %v607
        %v610 = vshrl.u32 %v195, 16
        %v612 = vrot.slane %v610, 4
        %v613 = vshll.u32 %v195, 16
        %v615 = vrot.slane %v613, 5
        %v616 = vor.u32 %v612, %v615
        %v617 = vrot.slane %v616, 4
        %v619 = vshll.u32 %v196, 16
        %v621 = vrot.slane %v619, 5
        %v622 = vsel %vm396, %v617, %v621
        %v624 = vshrl.u32 %v197, 16
        %v626 = vrot.slane %v624, 4
        %v627 = vshll.u32 %v197, 16
        %v629 = vrot.slane %v627, 5
        %v630 = vor.u32 %v626, %v629
        %v631 = vrot.slane %v630, 4
        %v633 = vshll.u32 %v198, 16
        %v635 = vrot.slane %v633, 5
        %v636 = vsel %vm396, %v631, %v635
        %v638 = vshrl.u32 %v199, 16
        %v640 = vrot.slane %v638, 4
        %v641 = vshll.u32 %v199, 16
        %v643 = vrot.slane %v641, 5
        %v644 = vor.u32 %v640, %v643
        %v645 = vrot.slane %v644, 4
        %v647 = vshll.u32 %v200, 16
        %v649 = vrot.slane %v647, 5
        %v650 = vsel %vm396, %v645, %v649
        %v652 = vshrl.u32 %v201, 16
        %v654 = vrot.slane %v652, 4
        %v655 = vshll.u32 %v201, 16
        %v657 = vrot.slane %v655, 5
        %v658 = vor.u32 %v654, %v657
        %v659 = vrot.slane %v658, 4
        %v661 = vshll.u32 %v202, 16
        %v663 = vrot.slane %v661, 5
        %v664 = vsel %vm396, %v659, %v663
        %v666 = vshrl.u32 %v203, 16
        %v668 = vrot.slane %v666, 4
        %v669 = vshll.u32 %v203, 16
        %v671 = vrot.slane %v669, 5
        %v672 = vor.u32 %v668, %v671
        %v673 = vrot.slane %v672, 4
        %v675 = vshll.u32 %v204, 16
        %v677 = vrot.slane %v675, 5
        %v678 = vsel %vm396, %v673, %v677
        %v680 = vshrl.u32 %v205, 16
        %v682 = vrot.slane %v680, 4
        %v683 = vshll.u32 %v205, 16
        %v685 = vrot.slane %v683, 5
        %v686 = vor.u32 %v682, %v685
        %v687 = vrot.slane %v686, 4
        %v689 = vshll.u32 %v206, 16
        %v691 = vrot.slane %v689, 5
        %v692 = vsel %vm396, %v687, %v691
        %s693 = scalar_lea.vmem %s1, 24
        %v694 = vld [vmem:[%s693] sm:$0xf]
        %v695 = vld [vmem:[%s693 + $0x4] sm:$0x3]
        %v696 = vunpack.c.l.b16 %v594
        %v697 = vunpack.c.l.b16 %v608
        %v698 = vunpack.c.l.b16 %v622
        %v699 = vunpack.c.l.b16 %v636
        %v700 = vunpack.c.l.b16 %v650
        %v701 = vunpack.c.l.b16 %v664
        %v702 = vunpack.c.l.b16 %v678
        %v703 = vunpack.c.l.b16 %v692
        %v704 = vpack.c.b16 %v697, %v696
        %v705 = vpack.c.b16 %v699, %v698
        %v706 = vpack.c.b16 %v701, %v700
        %v707 = vpack.c.b16 %v703, %v702
        %v710 = vunpack.c.l.b16 %v694
        %v711 = vunpack.c.l.b16 %v695
        %v712 = vpack.c.b16 %v711, %v710
        %v714 = vsel %vm279, %v704, 0
        %v717 = vsel %vm279, %v705, 0
        %v720 = vsel %vm279, %v706, 0
        %v723 = vsel %vm279, %v707, 0
        %v726 = vsel %vm292, %v712, 0
        %728 = vmatpush.bf16.msra.mxu0 0
        %729 = vmatpush.bf16.msra.mxu0 0
        %730 = vmatpush.bf16.msra.mxu0 0
        %731 = vmatpush.bf16.msra.mxu0 0
        %732 = vmatpush.bf16.msra.mxu0 0
        %733 = vmatpush.bf16.msra.mxu0 0
        %734 = vmatpush.bf16.msra.mxu0 0
        %735 = vmatpush.bf16.msra.mxu0 %v726
        %736 = vmatmul.bf16.gmra.mxu0 %v714
        %v737 = vpop.f32.mrf.mxu0
        %v738 = vadd.f32 0.0, %v737
        %v739 = vpop.f32.mrf.mxu0
        %v740 = vadd.f32 0.0, %v739
        %741 = vmatmul.bf16.gmra.mxu0 %v717
        %v742 = vpop.f32.mrf.mxu0
        %v743 = vadd.f32 0.0, %v742
        %v744 = vpop.f32.mrf.mxu0
        %v745 = vadd.f32 0.0, %v744
        %746 = vmatmul.bf16.gmra.mxu0 %v720
        %v747 = vpop.f32.mrf.mxu0
        %v748 = vadd.f32 0.0, %v747
        %v749 = vpop.f32.mrf.mxu0
        %v750 = vadd.f32 0.0, %v749
        %751 = vmatmul.bf16.gmra.mxu0 %v723
        %v752 = vpop.f32.mrf.mxu0
        %v753 = vadd.f32 0.0, %v752
        %v754 = vpop.f32.mrf.mxu0
        %v755 = vadd.f32 0.0, %v754
        %756 = vdwg.mxu0
        %v757 = vadd.f32 %v573, %v738
        %v758 = vadd.f32 %v574, %v740
        %v759 = vadd.f32 %v575, %v743
        %v760 = vadd.f32 %v576, %v745
        %v761 = vadd.f32 %v577, %v748
        %v762 = vadd.f32 %v578, %v750
        %v763 = vadd.f32 %v579, %v753
        %v764 = vadd.f32 %v580, %v755
        %vm773 = vcmask 1042432
        %vm774 = vcmask 1046532
        %vm775 = vmor %vm773, %vm774
        %v776 = vrot.slane %v170, 5
        %v777 = vrot.slane %v776, 4
        %v778 = vrot.slane %v171, 5
        %v779 = vsel %vm775, %v777, %v778
        %v780 = vrot.slane %v172, 5
        %v781 = vrot.slane %v780, 4
        %v782 = vrot.slane %v173, 5
        %v783 = vsel %vm775, %v781, %v782
        %v784 = vrot.slane %v174, 5
        %v785 = vrot.slane %v784, 4
        %v786 = vrot.slane %v175, 5
        %v787 = vsel %vm775, %v785, %v786
        %v788 = vrot.slane %v176, 5
        %v789 = vrot.slane %v788, 4
        %v790 = vrot.slane %v177, 5
        %v791 = vsel %vm775, %v789, %v790
        %v792 = vrot.slane %v178, 5
        %v793 = vrot.slane %v792, 4
        %v794 = vrot.slane %v179, 5
        %v795 = vsel %vm775, %v793, %v794
        %v796 = vrot.slane %v180, 5
        %v797 = vrot.slane %v796, 4
        %v798 = vrot.slane %v181, 5
        %v799 = vsel %vm775, %v797, %v798
        %v800 = vrot.slane %v182, 5
        %v801 = vrot.slane %v800, 4
        %v802 = vrot.slane %v183, 5
        %v803 = vsel %vm775, %v801, %v802
        %v804 = vrot.slane %v184, 5
        %v805 = vrot.slane %v804, 4
        %v806 = vrot.slane %v185, 5
        %v807 = vsel %vm775, %v805, %v806
        %s808 = scalar_lea.vmem %s1, 32
        %v809 = vld [vmem:[%s808] sm:$0xf]
        %v810 = vld [vmem:[%s808 + $0x4] sm:$0x3]
        %v811 = vunpack.c.l.b16 %v779
        %v812 = vunpack.c.l.b16 %v783
        %v813 = vunpack.c.l.b16 %v787
        %v814 = vunpack.c.l.b16 %v791
        %v815 = vunpack.c.l.b16 %v795
        %v816 = vunpack.c.l.b16 %v799
        %v817 = vunpack.c.l.b16 %v803
        %v818 = vunpack.c.l.b16 %v807
        %v819 = vpack.c.b16 %v812, %v811
        %v820 = vpack.c.b16 %v814, %v813
        %v821 = vpack.c.b16 %v816, %v815
        %v822 = vpack.c.b16 %v818, %v817
        %v825 = vunpack.c.l.b16 %v809
        %v826 = vunpack.c.l.b16 %v810
        %v827 = vpack.c.b16 %v826, %v825
        %v829 = vsel %vm279, %v819, 0
        %v832 = vsel %vm279, %v820, 0
        %v835 = vsel %vm279, %v821, 0
        %v838 = vsel %vm279, %v822, 0
        %v841 = vsel %vm292, %v827, 0
        %843 = vmatpush.bf16.msra.mxu0 0
        %844 = vmatpush.bf16.msra.mxu0 0
        %845 = vmatpush.bf16.msra.mxu0 0
        %846 = vmatpush.bf16.msra.mxu0 0
        %847 = vmatpush.bf16.msra.mxu0 0
        %848 = vmatpush.bf16.msra.mxu0 0
        %849 = vmatpush.bf16.msra.mxu0 0
        %850 = vmatpush.bf16.msra.mxu0 %v841
        %851 = vmatmul.bf16.gmra.mxu0 %v829
        %v852 = vpop.f32.mrf.mxu0
        %v853 = vadd.f32 0.0, %v852
        %v854 = vpop.f32.mrf.mxu0
        %v855 = vadd.f32 0.0, %v854
        %856 = vmatmul.bf16.gmra.mxu0 %v832
        %v857 = vpop.f32.mrf.mxu0
        %v858 = vadd.f32 0.0, %v857
        %v859 = vpop.f32.mrf.mxu0
        %v860 = vadd.f32 0.0, %v859
        %861 = vmatmul.bf16.gmra.mxu0 %v835
        %v862 = vpop.f32.mrf.mxu0
        %v863 = vadd.f32 0.0, %v862
        %v864 = vpop.f32.mrf.mxu0
        %v865 = vadd.f32 0.0, %v864
        %866 = vmatmul.bf16.gmra.mxu0 %v838
        %v867 = vpop.f32.mrf.mxu0
        %v868 = vadd.f32 0.0, %v867
        %v869 = vpop.f32.mrf.mxu0
        %v870 = vadd.f32 0.0, %v869
        %871 = vdwg.mxu0
        %v872 = vadd.f32 %v757, %v853
        %v873 = vadd.f32 %v758, %v855
        %v874 = vadd.f32 %v759, %v858
        %v875 = vadd.f32 %v760, %v860
        %v876 = vadd.f32 %v761, %v863
        %v877 = vadd.f32 %v762, %v865
        %v878 = vadd.f32 %v763, %v868
        %v879 = vadd.f32 %v764, %v870
        %s880 = scalar_lea.vmem %s1, 40
        %v881 = vld [vmem:[%s880] sm:$0xf]
        %v882 = vld [vmem:[%s880 + $0x4] sm:$0x3]
        %v891 = vunpack.c.l.b16 %v212
        %v892 = vunpack.c.l.b16 %v214
        %v893 = vunpack.c.l.b16 %v216
        %v894 = vunpack.c.l.b16 %v218
        %v895 = vunpack.c.l.b16 %v220
        %v896 = vunpack.c.l.b16 %v222
        %v897 = vunpack.c.l.b16 %v224
        %v898 = vunpack.c.l.b16 %v226
        %v899 = vpack.c.b16 %v892, %v891
        %v900 = vpack.c.b16 %v894, %v893
        %v901 = vpack.c.b16 %v896, %v895
        %v902 = vpack.c.b16 %v898, %v897
        %v905 = vunpack.c.l.b16 %v881
        %v906 = vunpack.c.l.b16 %v882
        %v907 = vpack.c.b16 %v906, %v905
        %v909 = vsel %vm279, %v899, 0
        %v912 = vsel %vm279, %v900, 0
        %v915 = vsel %vm279, %v901, 0
        %v918 = vsel %vm279, %v902, 0
        %v921 = vsel %vm292, %v907, 0
        %923 = vmatpush.bf16.msra.mxu0 0
        %924 = vmatpush.bf16.msra.mxu0 0
        %925 = vmatpush.bf16.msra.mxu0 0
        %926 = vmatpush.bf16.msra.mxu0 0
        %927 = vmatpush.bf16.msra.mxu0 0
        %928 = vmatpush.bf16.msra.mxu0 0
        %929 = vmatpush.bf16.msra.mxu0 0
        %930 = vmatpush.bf16.msra.mxu0 %v921
        %931 = vmatmul.bf16.gmra.mxu0 %v909
        %v932 = vpop.f32.mrf.mxu0
        %v933 = vadd.f32 0.0, %v932
        %v934 = vpop.f32.mrf.mxu0
        %v935 = vadd.f32 0.0, %v934
        %936 = vmatmul.bf16.gmra.mxu0 %v912
        %v937 = vpop.f32.mrf.mxu0
        %v938 = vadd.f32 0.0, %v937
        %v939 = vpop.f32.mrf.mxu0
        %v940 = vadd.f32 0.0, %v939
        %941 = vmatmul.bf16.gmra.mxu0 %v915
        %v942 = vpop.f32.mrf.mxu0
        %v943 = vadd.f32 0.0, %v942
        %v944 = vpop.f32.mrf.mxu0
        %v945 = vadd.f32 0.0, %v944
        %946 = vmatmul.bf16.gmra.mxu0 %v918
        %v947 = vpop.f32.mrf.mxu0
        %v948 = vadd.f32 0.0, %v947
        %v949 = vpop.f32.mrf.mxu0
        %v950 = vadd.f32 0.0, %v949
        %951 = vdwg.mxu0
        %v952 = vadd.f32 %v872, %v933
        %v953 = vadd.f32 %v873, %v935
        %v954 = vadd.f32 %v874, %v938
        %v955 = vadd.f32 %v875, %v940
        %v956 = vadd.f32 %v876, %v943
        %v957 = vadd.f32 %v877, %v945
        %v958 = vadd.f32 %v878, %v948
        %v959 = vadd.f32 %v879, %v950
        %s960 = scalar_lea.vmem %s1, 48
        %v961 = vld [vmem:[%s960] sm:$0xf]
        %v962 = vld [vmem:[%s960 + $0x4] sm:$0x3]
        %v971 = vunpack.c.l.b16 %v231
        %v972 = vunpack.c.l.b16 %v233
        %v973 = vunpack.c.l.b16 %v235
        %v974 = vunpack.c.l.b16 %v237
        %v975 = vunpack.c.l.b16 %v239
        %v976 = vunpack.c.l.b16 %v241
        %v977 = vunpack.c.l.b16 %v243
        %v978 = vunpack.c.l.b16 %v245
        %v979 = vpack.c.b16 %v972, %v971
        %v980 = vpack.c.b16 %v974, %v973
        %v981 = vpack.c.b16 %v976, %v975
        %v982 = vpack.c.b16 %v978, %v977
        %v985 = vunpack.c.l.b16 %v961
        %v986 = vunpack.c.l.b16 %v962
        %v987 = vpack.c.b16 %v986, %v985
        %v989 = vsel %vm279, %v979, 0
        %v992 = vsel %vm279, %v980, 0
        %v995 = vsel %vm279, %v981, 0
        %v998 = vsel %vm279, %v982, 0
        %v1001 = vsel %vm292, %v987, 0
        %1003 = vmatpush.bf16.msra.mxu0 0
        %1004 = vmatpush.bf16.msra.mxu0 0
        %1005 = vmatpush.bf16.msra.mxu0 0
        %1006 = vmatpush.bf16.msra.mxu0 0
        %1007 = vmatpush.bf16.msra.mxu0 0
        %1008 = vmatpush.bf16.msra.mxu0 0
        %1009 = vmatpush.bf16.msra.mxu0 0
        %1010 = vmatpush.bf16.msra.mxu0 %v1001
        %1011 = vmatmul.bf16.gmra.mxu0 %v989
        %v1012 = vpop.f32.mrf.mxu0
        %v1013 = vadd.f32 0.0, %v1012
        %v1014 = vpop.f32.mrf.mxu0
        %v1015 = vadd.f32 0.0, %v1014
        %1016 = vmatmul.bf16.gmra.mxu0 %v992
        %v1017 = vpop.f32.mrf.mxu0
        %v1018 = vadd.f32 0.0, %v1017
        %v1019 = vpop.f32.mrf.mxu0
        %v1020 = vadd.f32 0.0, %v1019
        %1021 = vmatmul.bf16.gmra.mxu0 %v995
        %v1022 = vpop.f32.mrf.mxu0
        %v1023 = vadd.f32 0.0, %v1022
        %v1024 = vpop.f32.mrf.mxu0
        %v1025 = vadd.f32 0.0, %v1024
        %1026 = vmatmul.bf16.gmra.mxu0 %v998
        %v1027 = vpop.f32.mrf.mxu0
        %v1028 = vadd.f32 0.0, %v1027
        %v1029 = vpop.f32.mrf.mxu0
        %v1030 = vadd.f32 0.0, %v1029
        %1031 = vdwg.mxu0
        %v1032 = vadd.f32 %v952, %v1013
        %v1033 = vadd.f32 %v953, %v1015
        %v1034 = vadd.f32 %v954, %v1018
        %v1035 = vadd.f32 %v955, %v1020
        %v1036 = vadd.f32 %v956, %v1023
        %v1037 = vadd.f32 %v957, %v1025
        %v1038 = vadd.f32 %v958, %v1028
        %v1039 = vadd.f32 %v959, %v1030
        %v1041 = vshrl.u32 %v212, 16
        %v1043 = vrot.slane %v1041, 4
        %v1044 = vshll.u32 %v212, 16
        %v1046 = vrot.slane %v1044, 5
        %v1047 = vor.u32 %v1043, %v1046
        %v1048 = vrot.slane %v1047, 4
        %v1050 = vshll.u32 %v213, 16
        %v1052 = vrot.slane %v1050, 5
        %v1053 = vsel %vm396, %v1048, %v1052
        %v1055 = vshrl.u32 %v214, 16
        %v1057 = vrot.slane %v1055, 4
        %v1058 = vshll.u32 %v214, 16
        %v1060 = vrot.slane %v1058, 5
        %v1061 = vor.u32 %v1057, %v1060
        %v1062 = vrot.slane %v1061, 4
        %v1064 = vshll.u32 %v215, 16
        %v1066 = vrot.slane %v1064, 5
        %v1067 = vsel %vm396, %v1062, %v1066
        %v1069 = vshrl.u32 %v216, 16
        %v1071 = vrot.slane %v1069, 4
        %v1072 = vshll.u32 %v216, 16
        %v1074 = vrot.slane %v1072, 5
        %v1075 = vor.u32 %v1071, %v1074
        %v1076 = vrot.slane %v1075, 4
        %v1078 = vshll.u32 %v217, 16
        %v1080 = vrot.slane %v1078, 5
        %v1081 = vsel %vm396, %v1076, %v1080
        %v1083 = vshrl.u32 %v218, 16
        %v1085 = vrot.slane %v1083, 4
        %v1086 = vshll.u32 %v218, 16
        %v1088 = vrot.slane %v1086, 5
        %v1089 = vor.u32 %v1085, %v1088
        %v1090 = vrot.slane %v1089, 4
        %v1092 = vshll.u32 %v219, 16
        %v1094 = vrot.slane %v1092, 5
        %v1095 = vsel %vm396, %v1090, %v1094
        %v1097 = vshrl.u32 %v220, 16
        %v1099 = vrot.slane %v1097, 4
        %v1100 = vshll.u32 %v220, 16
        %v1102 = vrot.slane %v1100, 5
        %v1103 = vor.u32 %v1099, %v1102
        %v1104 = vrot.slane %v1103, 4
        %v1106 = vshll.u32 %v221, 16
        %v1108 = vrot.slane %v1106, 5
        %v1109 = vsel %vm396, %v1104, %v1108
        %v1111 = vshrl.u32 %v222, 16
        %v1113 = vrot.slane %v1111, 4
        %v1114 = vshll.u32 %v222, 16
        %v1116 = vrot.slane %v1114, 5
        %v1117 = vor.u32 %v1113, %v1116
        %v1118 = vrot.slane %v1117, 4
        %v1120 = vshll.u32 %v223, 16
        %v1122 = vrot.slane %v1120, 5
        %v1123 = vsel %vm396, %v1118, %v1122
        %v1125 = vshrl.u32 %v224, 16
        %v1127 = vrot.slane %v1125, 4
        %v1128 = vshll.u32 %v224, 16
        %v1130 = vrot.slane %v1128, 5
        %v1131 = vor.u32 %v1127, %v1130
        %v1132 = vrot.slane %v1131, 4
        %v1134 = vshll.u32 %v225, 16
        %v1136 = vrot.slane %v1134, 5
        %v1137 = vsel %vm396, %v1132, %v1136
        %v1139 = vshrl.u32 %v226, 16
        %v1141 = vrot.slane %v1139, 4
        %v1142 = vshll.u32 %v226, 16
        %v1144 = vrot.slane %v1142, 5
        %v1145 = vor.u32 %v1141, %v1144
        %v1146 = vrot.slane %v1145, 4
        %v1148 = vshll.u32 %v227, 16
        %v1150 = vrot.slane %v1148, 5
        %v1151 = vsel %vm396, %v1146, %v1150
        %s1152 = scalar_lea.vmem %s1, 56
        %v1153 = vld [vmem:[%s1152] sm:$0xf]
        %v1154 = vld [vmem:[%s1152 + $0x4] sm:$0x3]
        %v1155 = vunpack.c.l.b16 %v1053
        %v1156 = vunpack.c.l.b16 %v1067
        %v1157 = vunpack.c.l.b16 %v1081
        %v1158 = vunpack.c.l.b16 %v1095
        %v1159 = vunpack.c.l.b16 %v1109
        %v1160 = vunpack.c.l.b16 %v1123
        %v1161 = vunpack.c.l.b16 %v1137
        %v1162 = vunpack.c.l.b16 %v1151
        %v1163 = vpack.c.b16 %v1156, %v1155
        %v1164 = vpack.c.b16 %v1158, %v1157
        %v1165 = vpack.c.b16 %v1160, %v1159
        %v1166 = vpack.c.b16 %v1162, %v1161
        %v1169 = vunpack.c.l.b16 %v1153
        %v1170 = vunpack.c.l.b16 %v1154
        %v1171 = vpack.c.b16 %v1170, %v1169
        %v1173 = vsel %vm279, %v1163, 0
        %v1176 = vsel %vm279, %v1164, 0
        %v1179 = vsel %vm279, %v1165, 0
        %v1182 = vsel %vm279, %v1166, 0
        %v1185 = vsel %vm292, %v1171, 0
        %1187 = vmatpush.bf16.msra.mxu0 0
        %1188 = vmatpush.bf16.msra.mxu0 0
        %1189 = vmatpush.bf16.msra.mxu0 0
        %1190 = vmatpush.bf16.msra.mxu0 0
        %1191 = vmatpush.bf16.msra.mxu0 0
        %1192 = vmatpush.bf16.msra.mxu0 0
        %1193 = vmatpush.bf16.msra.mxu0 0
        %1194 = vmatpush.bf16.msra.mxu0 %v1185
        %1195 = vmatmul.bf16.gmra.mxu0 %v1173
        %v1196 = vpop.f32.mrf.mxu0
        %v1197 = vadd.f32 0.0, %v1196
        %v1198 = vpop.f32.mrf.mxu0
        %v1199 = vadd.f32 0.0, %v1198
        %1200 = vmatmul.bf16.gmra.mxu0 %v1176
        %v1201 = vpop.f32.mrf.mxu0
        %v1202 = vadd.f32 0.0, %v1201
        %v1203 = vpop.f32.mrf.mxu0
        %v1204 = vadd.f32 0.0, %v1203
        %1205 = vmatmul.bf16.gmra.mxu0 %v1179
        %v1206 = vpop.f32.mrf.mxu0
        %v1207 = vadd.f32 0.0, %v1206
        %v1208 = vpop.f32.mrf.mxu0
        %v1209 = vadd.f32 0.0, %v1208
        %1210 = vmatmul.bf16.gmra.mxu0 %v1182
        %v1211 = vpop.f32.mrf.mxu0
        %v1212 = vadd.f32 0.0, %v1211
        %v1213 = vpop.f32.mrf.mxu0
        %v1214 = vadd.f32 0.0, %v1213
        %1215 = vdwg.mxu0
        %v1216 = vadd.f32 %v1032, %v1197
        %v1217 = vadd.f32 %v1033, %v1199
        %v1218 = vadd.f32 %v1034, %v1202
        %v1219 = vadd.f32 %v1035, %v1204
        %v1220 = vadd.f32 %v1036, %v1207
        %v1221 = vadd.f32 %v1037, %v1209
        %v1222 = vadd.f32 %v1038, %v1212
        %v1223 = vadd.f32 %v1039, %v1214
        %v1225 = vshrl.u32 %v231, 16
        %v1227 = vrot.slane %v1225, 4
        %v1228 = vshll.u32 %v231, 16
        %v1230 = vrot.slane %v1228, 5
        %v1231 = vor.u32 %v1227, %v1230
        %v1232 = vrot.slane %v1231, 4
        %v1234 = vshll.u32 %v232, 16
        %v1236 = vrot.slane %v1234, 5
        %v1237 = vsel %vm396, %v1232, %v1236
        %v1239 = vshrl.u32 %v233, 16
        %v1241 = vrot.slane %v1239, 4
        %v1242 = vshll.u32 %v233, 16
        %v1244 = vrot.slane %v1242, 5
        %v1245 = vor.u32 %v1241, %v1244
        %v1246 = vrot.slane %v1245, 4
        %v1248 = vshll.u32 %v234, 16
        %v1250 = vrot.slane %v1248, 5
        %v1251 = vsel %vm396, %v1246, %v1250
        %v1253 = vshrl.u32 %v235, 16
        %v1255 = vrot.slane %v1253, 4
        %v1256 = vshll.u32 %v235, 16
        %v1258 = vrot.slane %v1256, 5
        %v1259 = vor.u32 %v1255, %v1258
        %v1260 = vrot.slane %v1259, 4
        %v1262 = vshll.u32 %v236, 16
        %v1264 = vrot.slane %v1262, 5
        %v1265 = vsel %vm396, %v1260, %v1264
        %v1267 = vshrl.u32 %v237, 16
        %v1269 = vrot.slane %v1267, 4
        %v1270 = vshll.u32 %v237, 16
        %v1272 = vrot.slane %v1270, 5
        %v1273 = vor.u32 %v1269, %v1272
        %v1274 = vrot.slane %v1273, 4
        %v1276 = vshll.u32 %v238, 16
        %v1278 = vrot.slane %v1276, 5
        %v1279 = vsel %vm396, %v1274, %v1278
        %v1281 = vshrl.u32 %v239, 16
        %v1283 = vrot.slane %v1281, 4
        %v1284 = vshll.u32 %v239, 16
        %v1286 = vrot.slane %v1284, 5
        %v1287 = vor.u32 %v1283, %v1286
        %v1288 = vrot.slane %v1287, 4
        %v1290 = vshll.u32 %v240, 16
        %v1292 = vrot.slane %v1290, 5
        %v1293 = vsel %vm396, %v1288, %v1292
        %v1295 = vshrl.u32 %v241, 16
        %v1297 = vrot.slane %v1295, 4
        %v1298 = vshll.u32 %v241, 16
        %v1300 = vrot.slane %v1298, 5
        %v1301 = vor.u32 %v1297, %v1300
        %v1302 = vrot.slane %v1301, 4
        %v1304 = vshll.u32 %v242, 16
        %v1306 = vrot.slane %v1304, 5
        %v1307 = vsel %vm396, %v1302, %v1306
        %v1309 = vshrl.u32 %v243, 16
        %v1311 = vrot.slane %v1309, 4
        %v1312 = vshll.u32 %v243, 16
        %v1314 = vrot.slane %v1312, 5
        %v1315 = vor.u32 %v1311, %v1314
        %v1316 = vrot.slane %v1315, 4
        %v1318 = vshll.u32 %v244, 16
        %v1320 = vrot.slane %v1318, 5
        %v1321 = vsel %vm396, %v1316, %v1320
        %v1323 = vshrl.u32 %v245, 16
        %v1325 = vrot.slane %v1323, 4
        %v1326 = vshll.u32 %v245, 16
        %v1328 = vrot.slane %v1326, 5
        %v1329 = vor.u32 %v1325, %v1328
        %v1330 = vrot.slane %v1329, 4
        %v1332 = vshll.u32 %v246, 16
        %v1334 = vrot.slane %v1332, 5
        %v1335 = vsel %vm396, %v1330, %v1334
        %s1336 = scalar_lea.vmem %s1, 64
        %v1337 = vld [vmem:[%s1336] sm:$0xf]
        %v1338 = vld [vmem:[%s1336 + $0x4] sm:$0x3]
        %v1339 = vunpack.c.l.b16 %v1237
        %v1340 = vunpack.c.l.b16 %v1251
        %v1341 = vunpack.c.l.b16 %v1265
        %v1342 = vunpack.c.l.b16 %v1279
        %v1343 = vunpack.c.l.b16 %v1293
        %v1344 = vunpack.c.l.b16 %v1307
        %v1345 = vunpack.c.l.b16 %v1321
        %v1346 = vunpack.c.l.b16 %v1335
        %v1347 = vpack.c.b16 %v1340, %v1339
        %v1348 = vpack.c.b16 %v1342, %v1341
        %v1349 = vpack.c.b16 %v1344, %v1343
        %v1350 = vpack.c.b16 %v1346, %v1345
        %v1353 = vunpack.c.l.b16 %v1337
        %v1354 = vunpack.c.l.b16 %v1338
        %v1355 = vpack.c.b16 %v1354, %v1353
        %v1357 = vsel %vm279, %v1347, 0
        %v1360 = vsel %vm279, %v1348, 0
        %v1363 = vsel %vm279, %v1349, 0
        %v1366 = vsel %vm279, %v1350, 0
        %v1369 = vsel %vm292, %v1355, 0
        %1371 = vmatpush.bf16.msra.mxu0 0
        %1372 = vmatpush.bf16.msra.mxu0 0
        %1373 = vmatpush.bf16.msra.mxu0 0
        %1374 = vmatpush.bf16.msra.mxu0 0
        %1375 = vmatpush.bf16.msra.mxu0 0
        %1376 = vmatpush.bf16.msra.mxu0 0
        %1377 = vmatpush.bf16.msra.mxu0 0
        %1378 = vmatpush.bf16.msra.mxu0 %v1369
        %1379 = vmatmul.bf16.gmra.mxu0 %v1357
        %v1380 = vpop.f32.mrf.mxu0
        %v1381 = vadd.f32 0.0, %v1380
        %v1382 = vpop.f32.mrf.mxu0
        %v1383 = vadd.f32 0.0, %v1382
        %1384 = vmatmul.bf16.gmra.mxu0 %v1360
        %v1385 = vpop.f32.mrf.mxu0
        %v1386 = vadd.f32 0.0, %v1385
        %v1387 = vpop.f32.mrf.mxu0
        %v1388 = vadd.f32 0.0, %v1387
        %1389 = vmatmul.bf16.gmra.mxu0 %v1363
        %v1390 = vpop.f32.mrf.mxu0
        %v1391 = vadd.f32 0.0, %v1390
        %v1392 = vpop.f32.mrf.mxu0
        %v1393 = vadd.f32 0.0, %v1392
        %1394 = vmatmul.bf16.gmra.mxu0 %v1366
        %v1395 = vpop.f32.mrf.mxu0
        %v1396 = vadd.f32 0.0, %v1395
        %v1397 = vpop.f32.mrf.mxu0
        %v1398 = vadd.f32 0.0, %v1397
        %1399 = vdwg.mxu0
        %v1400 = vadd.f32 %v1216, %v1381
        %v1401 = vadd.f32 %v1217, %v1383
        %v1402 = vadd.f32 %v1218, %v1386
        %v1403 = vadd.f32 %v1219, %v1388
        %v1404 = vadd.f32 %v1220, %v1391
        %v1405 = vadd.f32 %v1221, %v1393
        %v1406 = vadd.f32 %v1222, %v1396
        %v1407 = vadd.f32 %v1223, %v1398
        %v1416 = vrot.slane %v212, 5
        %v1417 = vrot.slane %v1416, 4
        %v1418 = vrot.slane %v213, 5
        %v1419 = vsel %vm775, %v1417, %v1418
        %v1420 = vrot.slane %v214, 5
        %v1421 = vrot.slane %v1420, 4
        %v1422 = vrot.slane %v215, 5
        %v1423 = vsel %vm775, %v1421, %v1422
        %v1424 = vrot.slane %v216, 5
        %v1425 = vrot.slane %v1424, 4
        %v1426 = vrot.slane %v217, 5
        %v1427 = vsel %vm775, %v1425, %v1426
        %v1428 = vrot.slane %v218, 5
        %v1429 = vrot.slane %v1428, 4
        %v1430 = vrot.slane %v219, 5
        %v1431 = vsel %vm775, %v1429, %v1430
        %v1432 = vrot.slane %v220, 5
        %v1433 = vrot.slane %v1432, 4
        %v1434 = vrot.slane %v221, 5
        %v1435 = vsel %vm775, %v1433, %v1434
        %v1436 = vrot.slane %v222, 5
        %v1437 = vrot.slane %v1436, 4
        %v1438 = vrot.slane %v223, 5
        %v1439 = vsel %vm775, %v1437, %v1438
        %v1440 = vrot.slane %v224, 5
        %v1441 = vrot.slane %v1440, 4
        %v1442 = vrot.slane %v225, 5
        %v1443 = vsel %vm775, %v1441, %v1442
        %v1444 = vrot.slane %v226, 5
        %v1445 = vrot.slane %v1444, 4
        %v1446 = vrot.slane %v227, 5
        %v1447 = vsel %vm775, %v1445, %v1446
        %s1448 = scalar_lea.vmem %s1, 72
        %v1449 = vld [vmem:[%s1448] sm:$0xf]
        %v1450 = vld [vmem:[%s1448 + $0x4] sm:$0x3]
        %v1451 = vunpack.c.l.b16 %v1419
        %v1452 = vunpack.c.l.b16 %v1423
        %v1453 = vunpack.c.l.b16 %v1427
        %v1454 = vunpack.c.l.b16 %v1431
        %v1455 = vunpack.c.l.b16 %v1435
        %v1456 = vunpack.c.l.b16 %v1439
        %v1457 = vunpack.c.l.b16 %v1443
        %v1458 = vunpack.c.l.b16 %v1447
        %v1459 = vpack.c.b16 %v1452, %v1451
        %v1460 = vpack.c.b16 %v1454, %v1453
        %v1461 = vpack.c.b16 %v1456, %v1455
        %v1462 = vpack.c.b16 %v1458, %v1457
        %v1465 = vunpack.c.l.b16 %v1449
        %v1466 = vunpack.c.l.b16 %v1450
        %v1467 = vpack.c.b16 %v1466, %v1465
        %v1469 = vsel %vm279, %v1459, 0
        %v1472 = vsel %vm279, %v1460, 0
        %v1475 = vsel %vm279, %v1461, 0
        %v1478 = vsel %vm279, %v1462, 0
        %v1481 = vsel %vm292, %v1467, 0
        %1483 = vmatpush.bf16.msra.mxu0 0
        %1484 = vmatpush.bf16.msra.mxu0 0
        %1485 = vmatpush.bf16.msra.mxu0 0
        %1486 = vmatpush.bf16.msra.mxu0 0
        %1487 = vmatpush.bf16.msra.mxu0 0
        %1488 = vmatpush.bf16.msra.mxu0 0
        %1489 = vmatpush.bf16.msra.mxu0 0
        %1490 = vmatpush.bf16.msra.mxu0 %v1481
        %1491 = vmatmul.bf16.gmra.mxu0 %v1469
        %v1492 = vpop.f32.mrf.mxu0
        %v1493 = vadd.f32 0.0, %v1492
        %v1494 = vpop.f32.mrf.mxu0
        %v1495 = vadd.f32 0.0, %v1494
        %1496 = vmatmul.bf16.gmra.mxu0 %v1472
        %v1497 = vpop.f32.mrf.mxu0
        %v1498 = vadd.f32 0.0, %v1497
        %v1499 = vpop.f32.mrf.mxu0
        %v1500 = vadd.f32 0.0, %v1499
        %1501 = vmatmul.bf16.gmra.mxu0 %v1475
        %v1502 = vpop.f32.mrf.mxu0
        %v1503 = vadd.f32 0.0, %v1502
        %v1504 = vpop.f32.mrf.mxu0
        %v1505 = vadd.f32 0.0, %v1504
        %1506 = vmatmul.bf16.gmra.mxu0 %v1478
        %v1507 = vpop.f32.mrf.mxu0
        %v1508 = vadd.f32 0.0, %v1507
        %v1509 = vpop.f32.mrf.mxu0
        %v1510 = vadd.f32 0.0, %v1509
        %1511 = vdwg.mxu0
        %v1512 = vadd.f32 %v1400, %v1493
        %v1513 = vadd.f32 %v1401, %v1495
        %v1514 = vadd.f32 %v1402, %v1498
        %v1515 = vadd.f32 %v1403, %v1500
        %v1516 = vadd.f32 %v1404, %v1503
        %v1517 = vadd.f32 %v1405, %v1505
        %v1518 = vadd.f32 %v1406, %v1508
        %v1519 = vadd.f32 %v1407, %v1510
        %s1520 = scalar_lea.vmem %s1, 80
        %v1521 = vld [vmem:[%s1520] sm:$0xf]
        %v1522 = vld [vmem:[%s1520 + $0x4] sm:$0x3]
        %v1524 = vunpack.c.l.b16 %v186
        %v1525 = vpack.c.b16 %v335, %v334
        %v1526 = vpack.c.b16 %v337, %v336
        %v1527 = vpack.c.b16 %v339, %v338
        %v1528 = vpack.c.b16 %v1524, %v340
        %v1531 = vunpack.c.l.b16 %v1521
        %v1532 = vunpack.c.l.b16 %v1522
        %v1533 = vpack.c.b16 %v1532, %v1531
        %v1535 = vsel %vm279, %v1525, 0
        %v1538 = vsel %vm279, %v1526, 0
        %v1541 = vsel %vm279, %v1527, 0
        %v1544 = vsel %vm279, %v1528, 0
        %v1547 = vsel %vm292, %v1533, 0
        %1549 = vmatpush.bf16.msra.mxu0 0
        %1550 = vmatpush.bf16.msra.mxu0 0
        %1551 = vmatpush.bf16.msra.mxu0 0
        %1552 = vmatpush.bf16.msra.mxu0 0
        %1553 = vmatpush.bf16.msra.mxu0 0
        %1554 = vmatpush.bf16.msra.mxu0 0
        %1555 = vmatpush.bf16.msra.mxu0 0
        %1556 = vmatpush.bf16.msra.mxu0 %v1547
        %1557 = vmatmul.bf16.gmra.mxu0 %v1535
        %v1558 = vpop.f32.mrf.mxu0
        %v1559 = vadd.f32 0.0, %v1558
        %v1560 = vpop.f32.mrf.mxu0
        %v1561 = vadd.f32 0.0, %v1560
        %1562 = vmatmul.bf16.gmra.mxu0 %v1538
        %v1563 = vpop.f32.mrf.mxu0
        %v1564 = vadd.f32 0.0, %v1563
        %v1565 = vpop.f32.mrf.mxu0
        %v1566 = vadd.f32 0.0, %v1565
        %1567 = vmatmul.bf16.gmra.mxu0 %v1541
        %v1568 = vpop.f32.mrf.mxu0
        %v1569 = vadd.f32 0.0, %v1568
        %v1570 = vpop.f32.mrf.mxu0
        %v1571 = vadd.f32 0.0, %v1570
        %1572 = vmatmul.bf16.gmra.mxu0 %v1544
        %v1573 = vpop.f32.mrf.mxu0
        %v1574 = vadd.f32 0.0, %v1573
        %v1575 = vpop.f32.mrf.mxu0
        %v1576 = vadd.f32 0.0, %v1575
        %1577 = vdwg.mxu0
        %v1578 = vadd.f32 %v1512, %v1559
        %v1579 = vadd.f32 %v1513, %v1561
        %v1580 = vadd.f32 %v1514, %v1564
        %v1581 = vadd.f32 %v1515, %v1566
        %v1582 = vadd.f32 %v1516, %v1569
        %v1583 = vadd.f32 %v1517, %v1571
        %v1584 = vadd.f32 %v1518, %v1574
        %v1585 = vadd.f32 %v1519, %v1576
        %s1586 = scalar_lea.vmem %s1, 88
        %v1587 = vld [vmem:[%s1586] sm:$0xf]
        %v1588 = vld [vmem:[%s1586 + $0x4] sm:$0x3]
        %v1590 = vunpack.c.l.b16 %v207
        %v1591 = vpack.c.b16 %v264, %v263
        %v1592 = vpack.c.b16 %v266, %v265
        %v1593 = vpack.c.b16 %v268, %v267
        %v1594 = vpack.c.b16 %v1590, %v269
        %v1597 = vunpack.c.l.b16 %v1587
        %v1598 = vunpack.c.l.b16 %v1588
        %v1599 = vpack.c.b16 %v1598, %v1597
        %v1601 = vsel %vm279, %v1591, 0
        %v1604 = vsel %vm279, %v1592, 0
        %v1607 = vsel %vm279, %v1593, 0
        %v1610 = vsel %vm279, %v1594, 0
        %v1613 = vsel %vm292, %v1599, 0
        %1615 = vmatpush.bf16.msra.mxu0 0
        %1616 = vmatpush.bf16.msra.mxu0 0
        %1617 = vmatpush.bf16.msra.mxu0 0
        %1618 = vmatpush.bf16.msra.mxu0 0
        %1619 = vmatpush.bf16.msra.mxu0 0
        %1620 = vmatpush.bf16.msra.mxu0 0
        %1621 = vmatpush.bf16.msra.mxu0 0
        %1622 = vmatpush.bf16.msra.mxu0 %v1613
        %1623 = vmatmul.bf16.gmra.mxu0 %v1601
        %v1624 = vpop.f32.mrf.mxu0
        %v1625 = vadd.f32 0.0, %v1624
        %v1626 = vpop.f32.mrf.mxu0
        %v1627 = vadd.f32 0.0, %v1626
        %1628 = vmatmul.bf16.gmra.mxu0 %v1604
        %v1629 = vpop.f32.mrf.mxu0
        %v1630 = vadd.f32 0.0, %v1629
        %v1631 = vpop.f32.mrf.mxu0
        %v1632 = vadd.f32 0.0, %v1631
        %1633 = vmatmul.bf16.gmra.mxu0 %v1607
        %v1634 = vpop.f32.mrf.mxu0
        %v1635 = vadd.f32 0.0, %v1634
        %v1636 = vpop.f32.mrf.mxu0
        %v1637 = vadd.f32 0.0, %v1636
        %1638 = vmatmul.bf16.gmra.mxu0 %v1610
        %v1639 = vpop.f32.mrf.mxu0
        %v1640 = vadd.f32 0.0, %v1639
        %v1641 = vpop.f32.mrf.mxu0
        %v1642 = vadd.f32 0.0, %v1641
        %1643 = vdwg.mxu0
        %v1644 = vadd.f32 %v1578, %v1625
        %v1645 = vadd.f32 %v1579, %v1627
        %v1646 = vadd.f32 %v1580, %v1630
        %v1647 = vadd.f32 %v1581, %v1632
        %v1648 = vadd.f32 %v1582, %v1635
        %v1649 = vadd.f32 %v1583, %v1637
        %v1650 = vadd.f32 %v1584, %v1640
        %v1651 = vadd.f32 %v1585, %v1642
        %v1653 = vshrl.u32 %v186, 16
        %v1655 = vrot.slane %v1653, 4
        %v1656 = vshll.u32 %v186, 16
        %v1658 = vrot.slane %v1656, 5
        %v1659 = vor.u32 %v1655, %v1658
        %v1660 = vrot.slane %v1659, 4
        %v1662 = vshll.u32 %v187, 16
        %v1664 = vrot.slane %v1662, 5
        %v1665 = vsel %vm396, %v1660, %v1664
        %s1666 = scalar_lea.vmem %s1, 96
        %v1667 = vld [vmem:[%s1666] sm:$0xf]
        %v1668 = vld [vmem:[%s1666 + $0x4] sm:$0x3]
        %v1669 = vunpack.c.l.b16 %v1665
        %v1670 = vpack.c.b16 %v514, %v513
        %v1671 = vpack.c.b16 %v516, %v515
        %v1672 = vpack.c.b16 %v518, %v517
        %v1673 = vpack.c.b16 %v1669, %v519
        %v1676 = vunpack.c.l.b16 %v1667
        %v1677 = vunpack.c.l.b16 %v1668
        %v1678 = vpack.c.b16 %v1677, %v1676
        %v1680 = vsel %vm279, %v1670, 0
        %v1683 = vsel %vm279, %v1671, 0
        %v1686 = vsel %vm279, %v1672, 0
        %v1689 = vsel %vm279, %v1673, 0
        %v1692 = vsel %vm292, %v1678, 0
        %1694 = vmatpush.bf16.msra.mxu0 0
        %1695 = vmatpush.bf16.msra.mxu0 0
        %1696 = vmatpush.bf16.msra.mxu0 0
        %1697 = vmatpush.bf16.msra.mxu0 0
        %1698 = vmatpush.bf16.msra.mxu0 0
        %1699 = vmatpush.bf16.msra.mxu0 0
        %1700 = vmatpush.bf16.msra.mxu0 0
        %1701 = vmatpush.bf16.msra.mxu0 %v1692
        %1702 = vmatmul.bf16.gmra.mxu0 %v1680
        %v1703 = vpop.f32.mrf.mxu0
        %v1704 = vadd.f32 0.0, %v1703
        %v1705 = vpop.f32.mrf.mxu0
        %v1706 = vadd.f32 0.0, %v1705
        %1707 = vmatmul.bf16.gmra.mxu0 %v1683
        %v1708 = vpop.f32.mrf.mxu0
        %v1709 = vadd.f32 0.0, %v1708
        %v1710 = vpop.f32.mrf.mxu0
        %v1711 = vadd.f32 0.0, %v1710
        %1712 = vmatmul.bf16.gmra.mxu0 %v1686
        %v1713 = vpop.f32.mrf.mxu0
        %v1714 = vadd.f32 0.0, %v1713
        %v1715 = vpop.f32.mrf.mxu0
        %v1716 = vadd.f32 0.0, %v1715
        %1717 = vmatmul.bf16.gmra.mxu0 %v1689
        %v1718 = vpop.f32.mrf.mxu0
        %v1719 = vadd.f32 0.0, %v1718
        %v1720 = vpop.f32.mrf.mxu0
        %v1721 = vadd.f32 0.0, %v1720
        %1722 = vdwg.mxu0
        %v1723 = vadd.f32 %v1644, %v1704
        %v1724 = vadd.f32 %v1645, %v1706
        %v1725 = vadd.f32 %v1646, %v1709
        %v1726 = vadd.f32 %v1647, %v1711
        %v1727 = vadd.f32 %v1648, %v1714
        %v1728 = vadd.f32 %v1649, %v1716
        %v1729 = vadd.f32 %v1650, %v1719
        %v1730 = vadd.f32 %v1651, %v1721
        %v1732 = vshrl.u32 %v207, 16
        %v1734 = vrot.slane %v1732, 4
        %v1735 = vshll.u32 %v207, 16
        %v1737 = vrot.slane %v1735, 5
        %v1738 = vor.u32 %v1734, %v1737
        %v1739 = vrot.slane %v1738, 4
        %v1741 = vshll.u32 %v208, 16
        %v1743 = vrot.slane %v1741, 5
        %v1744 = vsel %vm396, %v1739, %v1743
        %s1745 = scalar_lea.vmem %s1, 104
        %v1746 = vld [vmem:[%s1745] sm:$0xf]
        %v1747 = vld [vmem:[%s1745 + $0x4] sm:$0x3]
        %v1748 = vunpack.c.l.b16 %v1744
        %v1749 = vpack.c.b16 %v698, %v697
        %v1750 = vpack.c.b16 %v700, %v699
        %v1751 = vpack.c.b16 %v702, %v701
        %v1752 = vpack.c.b16 %v1748, %v703
        %v1755 = vunpack.c.l.b16 %v1746
        %v1756 = vunpack.c.l.b16 %v1747
        %v1757 = vpack.c.b16 %v1756, %v1755
        %v1759 = vsel %vm279, %v1749, 0
        %v1762 = vsel %vm279, %v1750, 0
        %v1765 = vsel %vm279, %v1751, 0
        %v1768 = vsel %vm279, %v1752, 0
        %v1771 = vsel %vm292, %v1757, 0
        %1773 = vmatpush.bf16.msra.mxu0 0
        %1774 = vmatpush.bf16.msra.mxu0 0
        %1775 = vmatpush.bf16.msra.mxu0 0
        %1776 = vmatpush.bf16.msra.mxu0 0
        %1777 = vmatpush.bf16.msra.mxu0 0
        %1778 = vmatpush.bf16.msra.mxu0 0
        %1779 = vmatpush.bf16.msra.mxu0 0
        %1780 = vmatpush.bf16.msra.mxu0 %v1771
        %1781 = vmatmul.bf16.gmra.mxu0 %v1759
        %v1782 = vpop.f32.mrf.mxu0
        %v1783 = vadd.f32 0.0, %v1782
        %v1784 = vpop.f32.mrf.mxu0
        %v1785 = vadd.f32 0.0, %v1784
        %1786 = vmatmul.bf16.gmra.mxu0 %v1762
        %v1787 = vpop.f32.mrf.mxu0
        %v1788 = vadd.f32 0.0, %v1787
        %v1789 = vpop.f32.mrf.mxu0
        %v1790 = vadd.f32 0.0, %v1789
        %1791 = vmatmul.bf16.gmra.mxu0 %v1765
        %v1792 = vpop.f32.mrf.mxu0
        %v1793 = vadd.f32 0.0, %v1792
        %v1794 = vpop.f32.mrf.mxu0
        %v1795 = vadd.f32 0.0, %v1794
        %1796 = vmatmul.bf16.gmra.mxu0 %v1768
        %v1797 = vpop.f32.mrf.mxu0
        %v1798 = vadd.f32 0.0, %v1797
        %v1799 = vpop.f32.mrf.mxu0
        %v1800 = vadd.f32 0.0, %v1799
        %1801 = vdwg.mxu0
        %v1802 = vadd.f32 %v1723, %v1783
        %v1803 = vadd.f32 %v1724, %v1785
        %v1804 = vadd.f32 %v1725, %v1788
        %v1805 = vadd.f32 %v1726, %v1790
        %v1806 = vadd.f32 %v1727, %v1793
        %v1807 = vadd.f32 %v1728, %v1795
        %v1808 = vadd.f32 %v1729, %v1798
        %v1809 = vadd.f32 %v1730, %v1800
        %v1811 = vrot.slane %v186, 5
        %v1812 = vrot.slane %v1811, 4
        %v1813 = vrot.slane %v187, 5
        %v1814 = vsel %vm775, %v1812, %v1813
        %s1815 = scalar_lea.vmem %s1, 112
        %v1816 = vld [vmem:[%s1815] sm:$0xf]
        %v1817 = vld [vmem:[%s1815 + $0x4] sm:$0x3]
        %v1818 = vunpack.c.l.b16 %v1814
        %v1819 = vpack.c.b16 %v813, %v812
        %v1820 = vpack.c.b16 %v815, %v814
        %v1821 = vpack.c.b16 %v817, %v816
        %v1822 = vpack.c.b16 %v1818, %v818
        %v1825 = vunpack.c.l.b16 %v1816
        %v1826 = vunpack.c.l.b16 %v1817
        %v1827 = vpack.c.b16 %v1826, %v1825
        %v1829 = vsel %vm279, %v1819, 0
        %v1832 = vsel %vm279, %v1820, 0
        %v1835 = vsel %vm279, %v1821, 0
        %v1838 = vsel %vm279, %v1822, 0
        %v1841 = vsel %vm292, %v1827, 0
        %1843 = vmatpush.bf16.msra.mxu0 0
        %1844 = vmatpush.bf16.msra.mxu0 0
        %1845 = vmatpush.bf16.msra.mxu0 0
        %1846 = vmatpush.bf16.msra.mxu0 0
        %1847 = vmatpush.bf16.msra.mxu0 0
        %1848 = vmatpush.bf16.msra.mxu0 0
        %1849 = vmatpush.bf16.msra.mxu0 0
        %1850 = vmatpush.bf16.msra.mxu0 %v1841
        %1851 = vmatmul.bf16.gmra.mxu0 %v1829
        %v1852 = vpop.f32.mrf.mxu0
        %v1853 = vadd.f32 0.0, %v1852
        %v1854 = vpop.f32.mrf.mxu0
        %v1855 = vadd.f32 0.0, %v1854
        %1856 = vmatmul.bf16.gmra.mxu0 %v1832
        %v1857 = vpop.f32.mrf.mxu0
        %v1858 = vadd.f32 0.0, %v1857
        %v1859 = vpop.f32.mrf.mxu0
        %v1860 = vadd.f32 0.0, %v1859
        %1861 = vmatmul.bf16.gmra.mxu0 %v1835
        %v1862 = vpop.f32.mrf.mxu0
        %v1863 = vadd.f32 0.0, %v1862
        %v1864 = vpop.f32.mrf.mxu0
        %v1865 = vadd.f32 0.0, %v1864
        %1866 = vmatmul.bf16.gmra.mxu0 %v1838
        %v1867 = vpop.f32.mrf.mxu0
        %v1868 = vadd.f32 0.0, %v1867
        %v1869 = vpop.f32.mrf.mxu0
        %v1870 = vadd.f32 0.0, %v1869
        %1871 = vdwg.mxu0
        %v1872 = vadd.f32 %v1802, %v1853
        %v1873 = vadd.f32 %v1803, %v1855
        %v1874 = vadd.f32 %v1804, %v1858
        %v1875 = vadd.f32 %v1805, %v1860
        %v1876 = vadd.f32 %v1806, %v1863
        %v1877 = vadd.f32 %v1807, %v1865
        %v1878 = vadd.f32 %v1808, %v1868
        %v1879 = vadd.f32 %v1809, %v1870
        %s1880 = scalar_lea.vmem %s1, 120
        %v1881 = vld [vmem:[%s1880] sm:$0xf]
        %v1882 = vld [vmem:[%s1880 + $0x4] sm:$0x3]
        %v1884 = vunpack.c.l.b16 %v228
        %v1885 = vpack.c.b16 %v893, %v892
        %v1886 = vpack.c.b16 %v895, %v894
        %v1887 = vpack.c.b16 %v897, %v896
        %v1888 = vpack.c.b16 %v1884, %v898
        %v1891 = vunpack.c.l.b16 %v1881
        %v1892 = vunpack.c.l.b16 %v1882
        %v1893 = vpack.c.b16 %v1892, %v1891
        %v1895 = vsel %vm279, %v1885, 0
        %v1898 = vsel %vm279, %v1886, 0
        %v1901 = vsel %vm279, %v1887, 0
        %v1904 = vsel %vm279, %v1888, 0
        %v1907 = vsel %vm292, %v1893, 0
        %1909 = vmatpush.bf16.msra.mxu0 0
        %1910 = vmatpush.bf16.msra.mxu0 0
        %1911 = vmatpush.bf16.msra.mxu0 0
        %1912 = vmatpush.bf16.msra.mxu0 0
        %1913 = vmatpush.bf16.msra.mxu0 0
        %1914 = vmatpush.bf16.msra.mxu0 0
        %1915 = vmatpush.bf16.msra.mxu0 0
        %1916 = vmatpush.bf16.msra.mxu0 %v1907
        %1917 = vmatmul.bf16.gmra.mxu0 %v1895
        %v1918 = vpop.f32.mrf.mxu0
        %v1919 = vadd.f32 0.0, %v1918
        %v1920 = vpop.f32.mrf.mxu0
        %v1921 = vadd.f32 0.0, %v1920
        %1922 = vmatmul.bf16.gmra.mxu0 %v1898
        %v1923 = vpop.f32.mrf.mxu0
        %v1924 = vadd.f32 0.0, %v1923
        %v1925 = vpop.f32.mrf.mxu0
        %v1926 = vadd.f32 0.0, %v1925
        %1927 = vmatmul.bf16.gmra.mxu0 %v1901
        %v1928 = vpop.f32.mrf.mxu0
        %v1929 = vadd.f32 0.0, %v1928
        %v1930 = vpop.f32.mrf.mxu0
        %v1931 = vadd.f32 0.0, %v1930
        %1932 = vmatmul.bf16.gmra.mxu0 %v1904
        %v1933 = vpop.f32.mrf.mxu0
        %v1934 = vadd.f32 0.0, %v1933
        %v1935 = vpop.f32.mrf.mxu0
        %v1936 = vadd.f32 0.0, %v1935
        %1937 = vdwg.mxu0
        %v1938 = vadd.f32 %v1872, %v1919
        %v1939 = vadd.f32 %v1873, %v1921
        %v1940 = vadd.f32 %v1874, %v1924
        %v1941 = vadd.f32 %v1875, %v1926
        %v1942 = vadd.f32 %v1876, %v1929
        %v1943 = vadd.f32 %v1877, %v1931
        %v1944 = vadd.f32 %v1878, %v1934
        %v1945 = vadd.f32 %v1879, %v1936
        %s1946 = scalar_lea.vmem %s1, 128
        %v1947 = vld [vmem:[%s1946] sm:$0xf]
        %v1948 = vld [vmem:[%s1946 + $0x4] sm:$0x3]
        %v1950 = vunpack.c.l.b16 %v247
        %v1951 = vpack.c.b16 %v973, %v972
        %v1952 = vpack.c.b16 %v975, %v974
        %v1953 = vpack.c.b16 %v977, %v976
        %v1954 = vpack.c.b16 %v1950, %v978
        %v1957 = vunpack.c.l.b16 %v1947
        %v1958 = vunpack.c.l.b16 %v1948
        %v1959 = vpack.c.b16 %v1958, %v1957
        %v1961 = vsel %vm279, %v1951, 0
        %v1964 = vsel %vm279, %v1952, 0
        %v1967 = vsel %vm279, %v1953, 0
        %v1970 = vsel %vm279, %v1954, 0
        %v1973 = vsel %vm292, %v1959, 0
        %1975 = vmatpush.bf16.msra.mxu0 0
        %1976 = vmatpush.bf16.msra.mxu0 0
        %1977 = vmatpush.bf16.msra.mxu0 0
        %1978 = vmatpush.bf16.msra.mxu0 0
        %1979 = vmatpush.bf16.msra.mxu0 0
        %1980 = vmatpush.bf16.msra.mxu0 0
        %1981 = vmatpush.bf16.msra.mxu0 0
        %1982 = vmatpush.bf16.msra.mxu0 %v1973
        %1983 = vmatmul.bf16.gmra.mxu0 %v1961
        %v1984 = vpop.f32.mrf.mxu0
        %v1985 = vadd.f32 0.0, %v1984
        %v1986 = vpop.f32.mrf.mxu0
        %v1987 = vadd.f32 0.0, %v1986
        %1988 = vmatmul.bf16.gmra.mxu0 %v1964
        %v1989 = vpop.f32.mrf.mxu0
        %v1990 = vadd.f32 0.0, %v1989
        %v1991 = vpop.f32.mrf.mxu0
        %v1992 = vadd.f32 0.0, %v1991
        %1993 = vmatmul.bf16.gmra.mxu0 %v1967
        %v1994 = vpop.f32.mrf.mxu0
        %v1995 = vadd.f32 0.0, %v1994
        %v1996 = vpop.f32.mrf.mxu0
        %v1997 = vadd.f32 0.0, %v1996
        %1998 = vmatmul.bf16.gmra.mxu0 %v1970
        %v1999 = vpop.f32.mrf.mxu0
        %v2000 = vadd.f32 0.0, %v1999
        %v2001 = vpop.f32.mrf.mxu0
        %v2002 = vadd.f32 0.0, %v2001
        %2003 = vdwg.mxu0
        %v2004 = vadd.f32 %v1938, %v1985
        %v2005 = vadd.f32 %v1939, %v1987
        %v2006 = vadd.f32 %v1940, %v1990
        %v2007 = vadd.f32 %v1941, %v1992
        %v2008 = vadd.f32 %v1942, %v1995
        %v2009 = vadd.f32 %v1943, %v1997
        %v2010 = vadd.f32 %v1944, %v2000
        %v2011 = vadd.f32 %v1945, %v2002
        %v2013 = vshrl.u32 %v228, 16
        %v2015 = vrot.slane %v2013, 4
        %v2016 = vshll.u32 %v228, 16
        %v2018 = vrot.slane %v2016, 5
        %v2019 = vor.u32 %v2015, %v2018
        %v2020 = vrot.slane %v2019, 4
        %v2022 = vshll.u32 %v229, 16
        %v2024 = vrot.slane %v2022, 5
        %v2025 = vsel %vm396, %v2020, %v2024
        %s2026 = scalar_lea.vmem %s1, 136
        %v2027 = vld [vmem:[%s2026] sm:$0xf]
        %v2028 = vld [vmem:[%s2026 + $0x4] sm:$0x3]
        %v2029 = vunpack.c.l.b16 %v2025
        %v2030 = vpack.c.b16 %v1157, %v1156
        %v2031 = vpack.c.b16 %v1159, %v1158
        %v2032 = vpack.c.b16 %v1161, %v1160
        %v2033 = vpack.c.b16 %v2029, %v1162
        %v2036 = vunpack.c.l.b16 %v2027
        %v2037 = vunpack.c.l.b16 %v2028
        %v2038 = vpack.c.b16 %v2037, %v2036
        %v2040 = vsel %vm279, %v2030, 0
        %v2043 = vsel %vm279, %v2031, 0
        %v2046 = vsel %vm279, %v2032, 0
        %v2049 = vsel %vm279, %v2033, 0
        %v2052 = vsel %vm292, %v2038, 0
        %2054 = vmatpush.bf16.msra.mxu0 0
        %2055 = vmatpush.bf16.msra.mxu0 0
        %2056 = vmatpush.bf16.msra.mxu0 0
        %2057 = vmatpush.bf16.msra.mxu0 0
        %2058 = vmatpush.bf16.msra.mxu0 0
        %2059 = vmatpush.bf16.msra.mxu0 0
        %2060 = vmatpush.bf16.msra.mxu0 0
        %2061 = vmatpush.bf16.msra.mxu0 %v2052
        %2062 = vmatmul.bf16.gmra.mxu0 %v2040
        %v2063 = vpop.f32.mrf.mxu0
        %v2064 = vadd.f32 0.0, %v2063
        %v2065 = vpop.f32.mrf.mxu0
        %v2066 = vadd.f32 0.0, %v2065
        %2067 = vmatmul.bf16.gmra.mxu0 %v2043
        %v2068 = vpop.f32.mrf.mxu0
        %v2069 = vadd.f32 0.0, %v2068
        %v2070 = vpop.f32.mrf.mxu0
        %v2071 = vadd.f32 0.0, %v2070
        %2072 = vmatmul.bf16.gmra.mxu0 %v2046
        %v2073 = vpop.f32.mrf.mxu0
        %v2074 = vadd.f32 0.0, %v2073
        %v2075 = vpop.f32.mrf.mxu0
        %v2076 = vadd.f32 0.0, %v2075
        %2077 = vmatmul.bf16.gmra.mxu0 %v2049
        %v2078 = vpop.f32.mrf.mxu0
        %v2079 = vadd.f32 0.0, %v2078
        %v2080 = vpop.f32.mrf.mxu0
        %v2081 = vadd.f32 0.0, %v2080
        %2082 = vdwg.mxu0
        %v2083 = vadd.f32 %v2004, %v2064
        %v2084 = vadd.f32 %v2005, %v2066
        %v2085 = vadd.f32 %v2006, %v2069
        %v2086 = vadd.f32 %v2007, %v2071
        %v2087 = vadd.f32 %v2008, %v2074
        %v2088 = vadd.f32 %v2009, %v2076
        %v2089 = vadd.f32 %v2010, %v2079
        %v2090 = vadd.f32 %v2011, %v2081
        %v2092 = vshrl.u32 %v247, 16
        %v2094 = vrot.slane %v2092, 4
        %v2095 = vshll.u32 %v247, 16
        %v2097 = vrot.slane %v2095, 5
        %v2098 = vor.u32 %v2094, %v2097
        %v2099 = vrot.slane %v2098, 4
        %v2101 = vshll.u32 %v248, 16
        %v2103 = vrot.slane %v2101, 5
        %v2104 = vsel %vm396, %v2099, %v2103
        %s2105 = scalar_lea.vmem %s1, 144
        %v2106 = vld [vmem:[%s2105] sm:$0xf]
        %v2107 = vld [vmem:[%s2105 + $0x4] sm:$0x3]
        %v2108 = vunpack.c.l.b16 %v2104
        %v2109 = vpack.c.b16 %v1341, %v1340
        %v2110 = vpack.c.b16 %v1343, %v1342
        %v2111 = vpack.c.b16 %v1345, %v1344
        %v2112 = vpack.c.b16 %v2108, %v1346
        %v2115 = vunpack.c.l.b16 %v2106
        %v2116 = vunpack.c.l.b16 %v2107
        %v2117 = vpack.c.b16 %v2116, %v2115
        %v2119 = vsel %vm279, %v2109, 0
        %v2122 = vsel %vm279, %v2110, 0
        %v2125 = vsel %vm279, %v2111, 0
        %v2128 = vsel %vm279, %v2112, 0
        %v2131 = vsel %vm292, %v2117, 0
        %2133 = vmatpush.bf16.msra.mxu0 0
        %2134 = vmatpush.bf16.msra.mxu0 0
        %2135 = vmatpush.bf16.msra.mxu0 0
        %2136 = vmatpush.bf16.msra.mxu0 0
        %2137 = vmatpush.bf16.msra.mxu0 0
        %2138 = vmatpush.bf16.msra.mxu0 0
        %2139 = vmatpush.bf16.msra.mxu0 0
        %2140 = vmatpush.bf16.msra.mxu0 %v2131
        %2141 = vmatmul.bf16.gmra.mxu0 %v2119
        %v2142 = vpop.f32.mrf.mxu0
        %v2143 = vadd.f32 0.0, %v2142
        %v2144 = vpop.f32.mrf.mxu0
        %v2145 = vadd.f32 0.0, %v2144
        %2146 = vmatmul.bf16.gmra.mxu0 %v2122
        %v2147 = vpop.f32.mrf.mxu0
        %v2148 = vadd.f32 0.0, %v2147
        %v2149 = vpop.f32.mrf.mxu0
        %v2150 = vadd.f32 0.0, %v2149
        %2151 = vmatmul.bf16.gmra.mxu0 %v2125
        %v2152 = vpop.f32.mrf.mxu0
        %v2153 = vadd.f32 0.0, %v2152
        %v2154 = vpop.f32.mrf.mxu0
        %v2155 = vadd.f32 0.0, %v2154
        %2156 = vmatmul.bf16.gmra.mxu0 %v2128
        %v2157 = vpop.f32.mrf.mxu0
        %v2158 = vadd.f32 0.0, %v2157
        %v2159 = vpop.f32.mrf.mxu0
        %v2160 = vadd.f32 0.0, %v2159
        %2161 = vdwg.mxu0
        %v2162 = vadd.f32 %v2083, %v2143
        %v2163 = vadd.f32 %v2084, %v2145
        %v2164 = vadd.f32 %v2085, %v2148
        %v2165 = vadd.f32 %v2086, %v2150
        %v2166 = vadd.f32 %v2087, %v2153
        %v2167 = vadd.f32 %v2088, %v2155
        %v2168 = vadd.f32 %v2089, %v2158
        %v2169 = vadd.f32 %v2090, %v2160
        %v2171 = vrot.slane %v228, 5
        %v2172 = vrot.slane %v2171, 4
        %v2173 = vrot.slane %v229, 5
        %v2174 = vsel %vm775, %v2172, %v2173
        %s2175 = scalar_lea.vmem %s1, 152
        %v2176 = vld [vmem:[%s2175] sm:$0xf]
        %v2177 = vld [vmem:[%s2175 + $0x4] sm:$0x3]
        %v2178 = vunpack.c.l.b16 %v2174
        %v2179 = vpack.c.b16 %v1453, %v1452
        %v2180 = vpack.c.b16 %v1455, %v1454
        %v2181 = vpack.c.b16 %v1457, %v1456
        %v2182 = vpack.c.b16 %v2178, %v1458
        %v2185 = vunpack.c.l.b16 %v2176
        %v2186 = vunpack.c.l.b16 %v2177
        %v2187 = vpack.c.b16 %v2186, %v2185
        %v2189 = vsel %vm279, %v2179, 0
        %v2192 = vsel %vm279, %v2180, 0
        %v2195 = vsel %vm279, %v2181, 0
        %v2198 = vsel %vm279, %v2182, 0
        %v2201 = vsel %vm292, %v2187, 0
        %2203 = vmatpush.bf16.msra.mxu0 0
        %2204 = vmatpush.bf16.msra.mxu0 0
        %2205 = vmatpush.bf16.msra.mxu0 0
        %2206 = vmatpush.bf16.msra.mxu0 0
        %2207 = vmatpush.bf16.msra.mxu0 0
        %2208 = vmatpush.bf16.msra.mxu0 0
        %2209 = vmatpush.bf16.msra.mxu0 0
        %2210 = vmatpush.bf16.msra.mxu0 %v2201
        %2211 = vmatmul.bf16.gmra.mxu0 %v2189
        %v2212 = vpop.f32.mrf.mxu0
        %v2213 = vadd.f32 0.0, %v2212
        %v2214 = vpop.f32.mrf.mxu0
        %v2215 = vadd.f32 0.0, %v2214
        %2216 = vmatmul.bf16.gmra.mxu0 %v2192
        %v2217 = vpop.f32.mrf.mxu0
        %v2218 = vadd.f32 0.0, %v2217
        %v2219 = vpop.f32.mrf.mxu0
        %v2220 = vadd.f32 0.0, %v2219
        %2221 = vmatmul.bf16.gmra.mxu0 %v2195
        %v2222 = vpop.f32.mrf.mxu0
        %v2223 = vadd.f32 0.0, %v2222
        %v2224 = vpop.f32.mrf.mxu0
        %v2225 = vadd.f32 0.0, %v2224
        %2226 = vmatmul.bf16.gmra.mxu0 %v2198
        %v2227 = vpop.f32.mrf.mxu0
        %v2228 = vadd.f32 0.0, %v2227
        %v2229 = vpop.f32.mrf.mxu0
        %v2230 = vadd.f32 0.0, %v2229
        %2231 = vdwg.mxu0
        %v2232 = vadd.f32 %v2162, %v2213
        %v2233 = vadd.f32 %v2163, %v2215
        %v2234 = vadd.f32 %v2164, %v2218
        %v2235 = vadd.f32 %v2165, %v2220
        %v2236 = vadd.f32 %v2166, %v2223
        %v2237 = vadd.f32 %v2167, %v2225
        %v2238 = vadd.f32 %v2168, %v2228
        %v2239 = vadd.f32 %v2169, %v2230
        %s2240 = scalar_lea.vmem %s1, 160
        %v2241 = vld [vmem:[%s2240] sm:$0xf]
        %v2242 = vld [vmem:[%s2240 + $0x4] sm:$0x3]
        %v2244 = vunpack.c.l.b16 %v188
        %v2245 = vpack.c.b16 %v2244, %v1524
        %v2248 = vunpack.c.l.b16 %v2241
        %v2249 = vunpack.c.l.b16 %v2242
        %v2250 = vpack.c.b16 %v2249, %v2248
        %v2252 = vsel %vm279, %v2245, 0
        %v2255 = vsel %vm292, %v2250, 0
        %2257 = vmatpush.bf16.msra.mxu0 0
        %2258 = vmatpush.bf16.msra.mxu0 0
        %2259 = vmatpush.bf16.msra.mxu0 0
        %2260 = vmatpush.bf16.msra.mxu0 0
        %2261 = vmatpush.bf16.msra.mxu0 0
        %2262 = vmatpush.bf16.msra.mxu0 0
        %2263 = vmatpush.bf16.msra.mxu0 0
        %2264 = vmatpush.bf16.msra.mxu0 %v2255
        %2265 = vmatmul.bf16.gmra.mxu0 %v354
        %v2266 = vpop.f32.mrf.mxu0
        %v2267 = vadd.f32 0.0, %v2266
        %v2268 = vpop.f32.mrf.mxu0
        %v2269 = vadd.f32 0.0, %v2268
        %2270 = vmatmul.bf16.gmra.mxu0 %v357
        %v2271 = vpop.f32.mrf.mxu0
        %v2272 = vadd.f32 0.0, %v2271
        %v2273 = vpop.f32.mrf.mxu0
        %v2274 = vadd.f32 0.0, %v2273
        %2275 = vmatmul.bf16.gmra.mxu0 %v360
        %v2276 = vpop.f32.mrf.mxu0
        %v2277 = vadd.f32 0.0, %v2276
        %v2278 = vpop.f32.mrf.mxu0
        %v2279 = vadd.f32 0.0, %v2278
        %2280 = vmatmul.bf16.gmra.mxu0 %v2252
        %v2281 = vpop.f32.mrf.mxu0
        %v2282 = vadd.f32 0.0, %v2281
        %v2283 = vpop.f32.mrf.mxu0
        %v2284 = vadd.f32 0.0, %v2283
        %2285 = vdwg.mxu0
        %v2286 = vadd.f32 %v2232, %v2267
        %v2287 = vadd.f32 %v2233, %v2269
        %v2288 = vadd.f32 %v2234, %v2272
        %v2289 = vadd.f32 %v2235, %v2274
        %v2290 = vadd.f32 %v2236, %v2277
        %v2291 = vadd.f32 %v2237, %v2279
        %v2292 = vadd.f32 %v2238, %v2282
        %v2293 = vadd.f32 %v2239, %v2284
        %s2294 = scalar_lea.vmem %s1, 168
        %v2295 = vld [vmem:[%s2294] sm:$0xf]
        %v2296 = vld [vmem:[%s2294 + $0x4] sm:$0x3]
        %v2298 = vunpack.c.l.b16 %v209
        %v2299 = vpack.c.b16 %v2298, %v1590
        %v2302 = vunpack.c.l.b16 %v2295
        %v2303 = vunpack.c.l.b16 %v2296
        %v2304 = vpack.c.b16 %v2303, %v2302
        %v2306 = vsel %vm279, %v2299, 0
        %v2309 = vsel %vm292, %v2304, 0
        %2311 = vmatpush.bf16.msra.mxu0 0
        %2312 = vmatpush.bf16.msra.mxu0 0
        %2313 = vmatpush.bf16.msra.mxu0 0
        %2314 = vmatpush.bf16.msra.mxu0 0
        %2315 = vmatpush.bf16.msra.mxu0 0
        %2316 = vmatpush.bf16.msra.mxu0 0
        %2317 = vmatpush.bf16.msra.mxu0 0
        %2318 = vmatpush.bf16.msra.mxu0 %v2309
        %2319 = vmatmul.bf16.gmra.mxu0 %v284
        %v2320 = vpop.f32.mrf.mxu0
        %v2321 = vadd.f32 0.0, %v2320
        %v2322 = vpop.f32.mrf.mxu0
        %v2323 = vadd.f32 0.0, %v2322
        %2324 = vmatmul.bf16.gmra.mxu0 %v287
        %v2325 = vpop.f32.mrf.mxu0
        %v2326 = vadd.f32 0.0, %v2325
        %v2327 = vpop.f32.mrf.mxu0
        %v2328 = vadd.f32 0.0, %v2327
        %2329 = vmatmul.bf16.gmra.mxu0 %v290
        %v2330 = vpop.f32.mrf.mxu0
        %v2331 = vadd.f32 0.0, %v2330
        %v2332 = vpop.f32.mrf.mxu0
        %v2333 = vadd.f32 0.0, %v2332
        %2334 = vmatmul.bf16.gmra.mxu0 %v2306
        %v2335 = vpop.f32.mrf.mxu0
        %v2336 = vadd.f32 0.0, %v2335
        %v2337 = vpop.f32.mrf.mxu0
        %v2338 = vadd.f32 0.0, %v2337
        %2339 = vdwg.mxu0
        %v2340 = vadd.f32 %v2286, %v2321
        %v2341 = vadd.f32 %v2287, %v2323
        %v2342 = vadd.f32 %v2288, %v2326
        %v2343 = vadd.f32 %v2289, %v2328
        %v2344 = vadd.f32 %v2290, %v2331
        %v2345 = vadd.f32 %v2291, %v2333
        %v2346 = vadd.f32 %v2292, %v2336
        %v2347 = vadd.f32 %v2293, %v2338
        %v2349 = vshrl.u32 %v188, 16
        %v2351 = vrot.slane %v2349, 4
        %v2352 = vshll.u32 %v188, 16
        %v2354 = vrot.slane %v2352, 5
        %v2355 = vor.u32 %v2351, %v2354
        %v2356 = vrot.slane %v2355, 4
        %v2358 = vshll.u32 %v189, 16
        %v2360 = vrot.slane %v2358, 5
        %v2361 = vsel %vm396, %v2356, %v2360
        %s2362 = scalar_lea.vmem %s1, 176
        %v2363 = vld [vmem:[%s2362] sm:$0xf]
        %v2364 = vld [vmem:[%s2362 + $0x4] sm:$0x3]
        %v2365 = vunpack.c.l.b16 %v2361
        %v2366 = vpack.c.b16 %v2365, %v1669
        %v2369 = vunpack.c.l.b16 %v2363
        %v2370 = vunpack.c.l.b16 %v2364
        %v2371 = vpack.c.b16 %v2370, %v2369
        %v2373 = vsel %vm279, %v2366, 0
        %v2376 = vsel %vm292, %v2371, 0
        %2378 = vmatpush.bf16.msra.mxu0 0
        %2379 = vmatpush.bf16.msra.mxu0 0
        %2380 = vmatpush.bf16.msra.mxu0 0
        %2381 = vmatpush.bf16.msra.mxu0 0
        %2382 = vmatpush.bf16.msra.mxu0 0
        %2383 = vmatpush.bf16.msra.mxu0 0
        %2384 = vmatpush.bf16.msra.mxu0 0
        %2385 = vmatpush.bf16.msra.mxu0 %v2376
        %2386 = vmatmul.bf16.gmra.mxu0 %v533
        %v2387 = vpop.f32.mrf.mxu0
        %v2388 = vadd.f32 0.0, %v2387
        %v2389 = vpop.f32.mrf.mxu0
        %v2390 = vadd.f32 0.0, %v2389
        %2391 = vmatmul.bf16.gmra.mxu0 %v536
        %v2392 = vpop.f32.mrf.mxu0
        %v2393 = vadd.f32 0.0, %v2392
        %v2394 = vpop.f32.mrf.mxu0
        %v2395 = vadd.f32 0.0, %v2394
        %2396 = vmatmul.bf16.gmra.mxu0 %v539
        %v2397 = vpop.f32.mrf.mxu0
        %v2398 = vadd.f32 0.0, %v2397
        %v2399 = vpop.f32.mrf.mxu0
        %v2400 = vadd.f32 0.0, %v2399
        %2401 = vmatmul.bf16.gmra.mxu0 %v2373
        %v2402 = vpop.f32.mrf.mxu0
        %v2403 = vadd.f32 0.0, %v2402
        %v2404 = vpop.f32.mrf.mxu0
        %v2405 = vadd.f32 0.0, %v2404
        %2406 = vdwg.mxu0
        %v2407 = vadd.f32 %v2340, %v2388
        %v2408 = vadd.f32 %v2341, %v2390
        %v2409 = vadd.f32 %v2342, %v2393
        %v2410 = vadd.f32 %v2343, %v2395
        %v2411 = vadd.f32 %v2344, %v2398
        %v2412 = vadd.f32 %v2345, %v2400
        %v2413 = vadd.f32 %v2346, %v2403
        %v2414 = vadd.f32 %v2347, %v2405
        %v2416 = vshrl.u32 %v209, 16
        %v2418 = vrot.slane %v2416, 4
        %v2419 = vshll.u32 %v209, 16
        %v2421 = vrot.slane %v2419, 5
        %v2422 = vor.u32 %v2418, %v2421
        %v2423 = vrot.slane %v2422, 4
        %v2425 = vshll.u32 %v210, 16
        %v2427 = vrot.slane %v2425, 5
        %v2428 = vsel %vm396, %v2423, %v2427
        %s2429 = scalar_lea.vmem %s1, 184
        %v2430 = vld [vmem:[%s2429] sm:$0xf]
        %v2431 = vld [vmem:[%s2429 + $0x4] sm:$0x3]
        %v2432 = vunpack.c.l.b16 %v2428
        %v2433 = vpack.c.b16 %v2432, %v1748
        %v2436 = vunpack.c.l.b16 %v2430
        %v2437 = vunpack.c.l.b16 %v2431
        %v2438 = vpack.c.b16 %v2437, %v2436
        %v2440 = vsel %vm279, %v2433, 0
        %v2443 = vsel %vm292, %v2438, 0
        %2445 = vmatpush.bf16.msra.mxu0 0
        %2446 = vmatpush.bf16.msra.mxu0 0
        %2447 = vmatpush.bf16.msra.mxu0 0
        %2448 = vmatpush.bf16.msra.mxu0 0
        %2449 = vmatpush.bf16.msra.mxu0 0
        %2450 = vmatpush.bf16.msra.mxu0 0
        %2451 = vmatpush.bf16.msra.mxu0 0
        %2452 = vmatpush.bf16.msra.mxu0 %v2443
        %2453 = vmatmul.bf16.gmra.mxu0 %v717
        %v2454 = vpop.f32.mrf.mxu0
        %v2455 = vadd.f32 0.0, %v2454
        %v2456 = vpop.f32.mrf.mxu0
        %v2457 = vadd.f32 0.0, %v2456
        %2458 = vmatmul.bf16.gmra.mxu0 %v720
        %v2459 = vpop.f32.mrf.mxu0
        %v2460 = vadd.f32 0.0, %v2459
        %v2461 = vpop.f32.mrf.mxu0
        %v2462 = vadd.f32 0.0, %v2461
        %2463 = vmatmul.bf16.gmra.mxu0 %v723
        %v2464 = vpop.f32.mrf.mxu0
        %v2465 = vadd.f32 0.0, %v2464
        %v2466 = vpop.f32.mrf.mxu0
        %v2467 = vadd.f32 0.0, %v2466
        %2468 = vmatmul.bf16.gmra.mxu0 %v2440
        %v2469 = vpop.f32.mrf.mxu0
        %v2470 = vadd.f32 0.0, %v2469
        %v2471 = vpop.f32.mrf.mxu0
        %v2472 = vadd.f32 0.0, %v2471
        %2473 = vdwg.mxu0
        %v2474 = vadd.f32 %v2407, %v2455
        %v2475 = vadd.f32 %v2408, %v2457
        %v2476 = vadd.f32 %v2409, %v2460
        %v2477 = vadd.f32 %v2410, %v2462
        %v2478 = vadd.f32 %v2411, %v2465
        %v2479 = vadd.f32 %v2412, %v2467
        %v2480 = vadd.f32 %v2413, %v2470
        %v2481 = vadd.f32 %v2414, %v2472
        %v2483 = vrot.slane %v188, 5
        %v2484 = vrot.slane %v2483, 4
        %v2485 = vrot.slane %v189, 5
        %v2486 = vsel %vm775, %v2484, %v2485
        %s2487 = scalar_lea.vmem %s1, 192
        %v2488 = vld [vmem:[%s2487] sm:$0xf]
        %v2489 = vld [vmem:[%s2487 + $0x4] sm:$0x3]
        %v2490 = vunpack.c.l.b16 %v2486
        %v2491 = vpack.c.b16 %v2490, %v1818
        %v2494 = vunpack.c.l.b16 %v2488
        %v2495 = vunpack.c.l.b16 %v2489
        %v2496 = vpack.c.b16 %v2495, %v2494
        %v2498 = vsel %vm279, %v2491, 0
        %v2501 = vsel %vm292, %v2496, 0
        %2503 = vmatpush.bf16.msra.mxu0 0
        %2504 = vmatpush.bf16.msra.mxu0 0
        %2505 = vmatpush.bf16.msra.mxu0 0
        %2506 = vmatpush.bf16.msra.mxu0 0
        %2507 = vmatpush.bf16.msra.mxu0 0
        %2508 = vmatpush.bf16.msra.mxu0 0
        %2509 = vmatpush.bf16.msra.mxu0 0
        %2510 = vmatpush.bf16.msra.mxu0 %v2501
        %2511 = vmatmul.bf16.gmra.mxu0 %v832
        %v2512 = vpop.f32.mrf.mxu0
        %v2513 = vadd.f32 0.0, %v2512
        %v2514 = vpop.f32.mrf.mxu0
        %v2515 = vadd.f32 0.0, %v2514
        %2516 = vmatmul.bf16.gmra.mxu0 %v835
        %v2517 = vpop.f32.mrf.mxu0
        %v2518 = vadd.f32 0.0, %v2517
        %v2519 = vpop.f32.mrf.mxu0
        %v2520 = vadd.f32 0.0, %v2519
        %2521 = vmatmul.bf16.gmra.mxu0 %v838
        %v2522 = vpop.f32.mrf.mxu0
        %v2523 = vadd.f32 0.0, %v2522
        %v2524 = vpop.f32.mrf.mxu0
        %v2525 = vadd.f32 0.0, %v2524
        %2526 = vmatmul.bf16.gmra.mxu0 %v2498
        %v2527 = vpop.f32.mrf.mxu0
        %v2528 = vadd.f32 0.0, %v2527
        %v2529 = vpop.f32.mrf.mxu0
        %v2530 = vadd.f32 0.0, %v2529
        %2531 = vdwg.mxu0
        %v2532 = vadd.f32 %v2474, %v2513
        %v2533 = vadd.f32 %v2475, %v2515
        %v2534 = vadd.f32 %v2476, %v2518
        %v2535 = vadd.f32 %v2477, %v2520
        %v2536 = vadd.f32 %v2478, %v2523
        %v2537 = vadd.f32 %v2479, %v2525
        %v2538 = vadd.f32 %v2480, %v2528
        %v2539 = vadd.f32 %v2481, %v2530
        %v2540 = vld [vmem:[%s2] sm:$0x1]
        %v2542 = vperm.slane %v2540, 0
        %v2544 = vadd.f32 %v2532, %v2542
        %v2545 = vadd.f32 %v2533, %v2542
        %v2546 = vadd.f32 %v2534, %v2542
        %v2547 = vadd.f32 %v2535, %v2542
        %v2548 = vadd.f32 %v2536, %v2542
        %v2549 = vadd.f32 %v2537, %v2542
        %v2550 = vadd.f32 %v2538, %v2542
        %v2551 = vadd.f32 %v2539, %v2542
        %v2552 = vmax.f32 %v2544, 0.0
        %v2553 = vmax.f32 %v2545, 0.0
        %v2554 = vmax.f32 %v2546, 0.0
        %v2555 = vmax.f32 %v2547, 0.0
        %v2556 = vmax.f32 %v2548, 0.0
        %v2557 = vmax.f32 %v2549, 0.0
        %v2558 = vmax.f32 %v2550, 0.0
        %v2559 = vmax.f32 %v2551, 0.0
        %v2560 = vpack.c.bf16 %v2552, %v2552
        %v2561 = vpack.c.bf16 %v2553, %v2553
        %v2562 = vpack.c.bf16 %v2554, %v2554
        %v2563 = vpack.c.bf16 %v2555, %v2555
        %v2564 = vpack.c.bf16 %v2556, %v2556
        %v2565 = vpack.c.bf16 %v2557, %v2557
        %v2566 = vpack.c.bf16 %v2558, %v2558
        %v2567 = vpack.c.bf16 %v2559, %v2559
        %vm2568 = vcmask 257024
        %2569 = vst.msk [vmem:[%s163] sm:$0xf] %vm2568, %v2560
        %2570 = vst.msk [vmem:[%s163 + $0x4] sm:$0xf] %vm2568, %v2561
        %2571 = vst.msk [vmem:[%s163 + $0x8] sm:$0xf] %vm2568, %v2562
        %2572 = vst.msk [vmem:[%s163 + $0xc] sm:$0xf] %vm2568, %v2563
        %2573 = vst.msk [vmem:[%s163 + $0x10] sm:$0xf] %vm2568, %v2564
        %2574 = vst.msk [vmem:[%s163 + $0x14] sm:$0xf] %vm2568, %v2565
        %2575 = vst.msk [vmem:[%s163 + $0x18] sm:$0xf] %vm2568, %v2566
        %2576 = vst.msk [vmem:[%s163 + $0x1c] sm:$0xf] %vm2568, %v2567
        %s2577 = sand.u32 %s93, 1
        %s2578 = scalar_lea.sflag [#allocation3], %s2577
        %s2579 = sand.u32 %s93, 1
        %s2580 = smul.addr %s2579, 32
        %s2581 = scalar_lea.vmem [#allocation2], %s2580
        // Predicated region
        $region33: #{tpu_custom_call.1} parent=31 // pred_check
          %p2582 = pneg %p103
        $region34: #{tpu_custom_call.1} parent=31 // pred_check_branch
          %2584 = sbr.rel (%p2582) target = $region36
        $region35: #{tpu_custom_call.1} parent=31 // pred_region
          %2586 = vsyncadd %s2578, 0
          %s2587 = smul.addr %s17, 8
          %s2588 = smul.addr %s2587, 4
          %s2589 = scalar_lea.hbm %s3, %s2588
          %s2590 = sshll.u32 %s2581, 4
          %s2591 = int_to_ptr.vmem [resolvable:$true] %s2590
          %s2592 = sshll.u32 %s2589, 4
          %s2593 = int_to_ptr.hbm [resolvable:$true] %s2592
          %2598 = dma.vmem_to_hbm [thread:$0]  %s2591, 512, %s2593, %s2578, 64, 64, 4
        $region36: #{tpu_custom_call.1} parent=31 // pred_fallthru
          _
      $region32: #{tpu_custom_call.1} parent=5 // pred_fallthru
        _
      %p2599 = scmp.le.s32.totalorder 2, %s12
      // Predicated region
      $region37: #{tpu_custom_call.1} parent=5 // pred_check
        %p2600 = pneg %p2599
      $region38: #{tpu_custom_call.1} parent=5 // pred_check_branch
        %2602 = sbr.rel (%p2600) target = $region40
      $region39: #{tpu_custom_call.1} parent=5 // pred_region
        %s2603 = ssub.s32 %s12, 2
        // Predicated region
        $region41: #{tpu_custom_call.1} parent=39 // pred_check
          %p2604 = pneg %p109
        $region42: #{tpu_custom_call.1} parent=39 // pred_check_branch
          %2606 = sbr.rel (%p2604) target = $region44
        $region43: #{tpu_custom_call.1} parent=39 // pred_region
          %s2607 = sand.u32 %s94, 1
          %s2608 = scalar_lea.sflag [#allocation3], %s2607
          %s2609 = sand.u32 %s94, 1
          %s2610 = smul.addr %s2609, 32
          %s2611 = scalar_lea.vmem [#allocation2], %s2610
          %2613 = dma.done %s2608, 512
        $region44: #{tpu_custom_call.1} parent=39 // pred_fallthru
          _
      $region40: #{tpu_custom_call.1} parent=5 // pred_fallthru
        _
    $region6: #{tpu_custom_call.1} parent=1 // loop_footer
      %s16 = sadd.s32 1, %s12
    $region7: #{tpu_custom_call.1} parent=1 // loop_footer_branch
      %11 = sbr.rel target = $region3
    $region8: #{tpu_custom_call.1} parent=1 // loop_exit
      _
    %2614 = vsyncpa [#allocation3], 1
    %s2615 = scalar_lea.sflag [#allocation3], 1
    %2616 = vsyncpa %s2615, 1

</llo_original>
